<compile_context>
chip_gen: v6e
topology: v6e:2x2x1
jax: 0.10.0
libtpu: 0.0.40
codegen_flags: <defaults>
</compile_context>

<pallas_src>
import math
import jax
import jax.numpy as jnp
from jax import lax
from jax.experimental import pallas as pl
from jax.experimental.pallas import tpu as pltpu


def _gnn_session_kernel(step):
    """Kernel closure for a static step count."""

    def kernel(a_in_ref, a_out_ref, h_ref,
               w_e_ref, b_e_ref, w_a_ref, w_b_ref, b_gi_ref,
               w_hh_ref, b_gh_ref, out_ref):
        TB, Sp, Hp = h_ref.shape

        a_in = a_in_ref[...]                  # (TB, Sp, Sp)  f32
        a_out = a_out_ref[...]                # (TB, Sp, Sp)  f32

        w_e = w_e_ref[...]                    # (Hp, 2Hp)     bf16
        b_e = b_e_ref[...]                    # (1, 2Hp)      f32
        w_a = w_a_ref[...]                    # (Hp, 3Hp)     bf16
        w_b = w_b_ref[...]                    # (Hp, 3Hp)     bf16
        b_gi = b_gi_ref[...]                  # (1, 3Hp)      f32
        w_hh = w_hh_ref[...]                  # (Hp, 3Hp)     bf16
        b_gh = b_gh_ref[...]                  # (1, 3Hp)      f32

        def cell(h):                          # h: (TB, Sp, Hp) f32
            h2 = h.reshape(TB * Sp, Hp)
            hb = h2.astype(jnp.bfloat16)

            # Fused linear_edge_in / linear_edge_out: one MXU matmul.
            e = jnp.dot(hb, w_e, preferred_element_type=jnp.float32) + b_e
            ein = e[:, :Hp].reshape(TB, Sp, Hp)
            eout = e[:, Hp:].reshape(TB, Sp, Hp)

            # Per-session adjacency message passing (kept in f32).
            inp_in = jnp.einsum('bij,bjh->bih', a_in, ein,
                                preferred_element_type=jnp.float32)
            inp_out = jnp.einsum('bij,bjh->bih', a_out, eout,
                                 preferred_element_type=jnp.float32)

            ii = inp_in.reshape(TB * Sp, Hp).astype(jnp.bfloat16)
            io = inp_out.reshape(TB * Sp, Hp).astype(jnp.bfloat16)

            # gi = [inp_in, inp_out] @ w_ih.T + (b_iah@Wa.T + b_oah@Wb.T + b_ih)
            gi = (jnp.dot(ii, w_a, preferred_element_type=jnp.float32)
                  + jnp.dot(io, w_b, preferred_element_type=jnp.float32)
                  + b_gi)                                       # (TB*Sp, 3Hp)
            gh = jnp.dot(hb, w_hh, preferred_element_type=jnp.float32) + b_gh

            i_r, i_i, i_n = gi[:, :Hp], gi[:, Hp:2 * Hp], gi[:, 2 * Hp:]
            h_r, h_i, h_n = gh[:, :Hp], gh[:, Hp:2 * Hp], gh[:, 2 * Hp:]

            # Gate math stays in f32 (safe on v5e, correct everywhere).
            resetgate = jax.nn.sigmoid(i_r + h_r)
            inputgate = jax.nn.sigmoid(i_i + h_i)
            newgate = jnp.tanh(i_n + resetgate * h_n)
            hy = newgate + inputgate * (h2 - newgate)
            return hy.reshape(TB, Sp, Hp)

        h = h_ref[...]
        if step <= 2:
            for _ in range(step):             # small static unroll
                h = cell(h)
        else:
            h = lax.fori_loop(0, step, lambda _, hh: cell(hh), h)
        out_ref[...] = h.astype(out_ref.dtype)

    return kernel


def session_graph_forward(inputs, A, params, *, step, tb=None):
    """inputs: (B, S) int32 item ids; A: (B, S, 2S) float32 adjacency."""
    B, S = inputs.shape
    H = params["embedding"].shape[1]
    f32, bf16 = jnp.float32, jnp.bfloat16

    Hp = ((H + 127) // 128) * 128             # lane-dense hidden dim
    Sp = ((S + 7) // 8) * 8                   # sublane-aligned sequence dim

    # --- embedding lookup (plain JAX glue), zero-padded to (B, Sp, Hp) ---
    hidden0 = params["embedding"][inputs].astype(f32)               # (B, S, H)
    hidden0 = jnp.pad(hidden0, ((0, 0), (0, Sp - S), (0, Hp - H)))

    # --- adjacency halves as separate, padded inputs (no in-kernel slice) ---
    a_in = jnp.pad(A[:, :, :S].astype(f32), ((0, 0), (0, Sp - S), (0, Sp - S)))
    a_out = jnp.pad(A[:, :, S:].astype(f32), ((0, 0), (0, Sp - S), (0, Sp - S)))

    # --- pre-transposed / fused / padded weights (trace time, free) ---
    # Fused edge projection: W_e = [w_edge_in.T | w_edge_out.T] -> (Hp, 2Hp)
    w_e = jnp.zeros((Hp, 2 * Hp), f32)
    w_e = w_e.at[:H, :H].set(params["w_edge_in"].T)
    w_e = w_e.at[:H, Hp:Hp + H].set(params["w_edge_out"].T)
    b_e = jnp.zeros((1, 2 * Hp), f32)
    b_e = b_e.at[0, :H].set(params["b_edge_in"])
    b_e = b_e.at[0, Hp:Hp + H].set(params["b_edge_out"])

    # Split w_ih into its input_in / input_out column halves; fold biases.
    w_ih_a = params["w_ih"][:, :H]            # (3H, H) acts on input_in
    w_ih_b = params["w_ih"][:, H:2 * H]       # (3H, H) acts on input_out
    b_gi_raw = (params["b_iah"] @ w_ih_a.T + params["b_oah"] @ w_ih_b.T
                + params["b_ih"])             # (3H,)

    def pad_gate_w(w_t):                      # (H, 3H) -> (Hp, 3Hp), per gate
        out = jnp.zeros((Hp, 3 * Hp), f32)
        for g in range(3):
            out = out.at[:H, g * Hp:g * Hp + H].set(w_t[:, g * H:(g + 1) * H])
        return out

    def pad_gate_b(b):                        # (3H,) -> (1, 3Hp), per gate
        out = jnp.zeros((1, 3 * Hp), f32)
        for g in range(3):
            out = out.at[0, g * Hp:g * Hp + H].set(b[g * H:(g + 1) * H])
        return out

    w_e = w_e.astype(bf16)
    w_a_p = pad_gate_w(w_ih_a.T).astype(bf16)
    w_b_p = pad_gate_w(w_ih_b.T).astype(bf16)
    w_hh_p = pad_gate_w(params["w_hh"].T).astype(bf16)
    b_gi_p = pad_gate_b(b_gi_raw)
    b_gh_p = pad_gate_b(params["b_hh"])

    # --- batch tile: aim for M = tb*Sp >= 128 rows per matmul, but keep the
    #     per-program working set small enough for v7x's 64 MiB VMEM. ---
    if tb is None:
        tb = max(1, 128 // Sp)
        per_session_bytes = (2 * Sp * Sp + 2 * Sp * Hp) * 4
        tb = max(1, min(tb, (8 * 1024 * 1024) // max(per_session_bytes, 1)))
    tb = min(tb, max(B, 1))

    Bp = ((B + tb - 1) // tb) * tb
    if Bp > B:
        pad_b = ((0, Bp - B), (0, 0), (0, 0))
        hidden0 = jnp.pad(hidden0, pad_b)
        a_in = jnp.pad(a_in, pad_b)
        a_out = jnp.pad(a_out, pad_b)
    grid = (Bp // tb,)

    # --- advisory cost estimate ---
    flops_per_step = (
        2 * Bp * Sp * Hp * (2 * Hp)           # fused edge projection
        + 2 * 2 * Bp * Sp * Sp * Hp           # adjacency products
        + 2 * 2 * Bp * Sp * Hp * (3 * Hp)     # gi (two matmuls)
        + 2 * Bp * Sp * Hp * (3 * Hp))        # gh
    weight_bytes = sum(int(x.size) * x.dtype.itemsize
                       for x in (w_e, b_e, w_a_p, w_b_p, b_gi_p, w_hh_p, b_gh_p))
    cost = pl.CostEstimate(
        flops=step * flops_per_step,
        transcendentals=step * 3 * Bp * Sp * Hp,
        bytes_accessed=int(a_in.size * 4 + a_out.size * 4 + hidden0.size * 4
                           + Bp * Sp * Hp * 4 + weight_bytes))

    full = lambda shape: pl.BlockSpec(shape, lambda b: (0,) * len(shape))

    out = pl.pallas_call(
        _gnn_session_kernel(step),
        out_shape=jax.ShapeDtypeStruct((Bp, Sp, Hp), jnp.float32),
        grid_spec=pltpu.PrefetchScalarGridSpec(
            num_scalar_prefetch=0,
            grid=grid,
            in_specs=[
                pl.BlockSpec((tb, Sp, Sp), lambda b: (b, 0, 0)),   # A_in
                pl.BlockSpec((tb, Sp, Sp), lambda b: (b, 0, 0)),   # A_out
                pl.BlockSpec((tb, Sp, Hp), lambda b: (b, 0, 0)),   # hidden
                full((Hp, 2 * Hp)), full((1, 2 * Hp)),             # W_e, b_e
                full((Hp, 3 * Hp)), full((Hp, 3 * Hp)),            # W_a, W_b
                full((1, 3 * Hp)),                                 # b_gi
                full((Hp, 3 * Hp)), full((1, 3 * Hp)),             # w_hh, b_gh
            ],
            out_specs=pl.BlockSpec((tb, Sp, Hp), lambda b: (b, 0, 0)),
        ),
        compiler_params=pltpu.CompilerParams(
            dimension_semantics=("parallel",)),
        cost_estimate=cost,
    )(a_in, a_out, hidden0,
      w_e, b_e, w_a_p, w_b_p, b_gi_p, w_hh_p, b_gh_p)

    return out[:B, :S, :H]


def reference_forward(inputs, A, params, *, step):
    """Pure-JAX f32 reference matching the PyTorch semantics."""
    H = params["embedding"].shape[1]
    S = inputs.shape[1]
    h = params["embedding"][inputs]
    for _ in range(step):
        ein = h @ params["w_edge_in"].T + params["b_edge_in"]
        eout = h @ params["w_edge_out"].T + params["b_edge_out"]
        inp_in = jnp.matmul(A[:, :, :S], ein) + params["b_iah"]
        inp_out = jnp.matmul(A[:, :, S:2 * S], eout) + params["b_oah"]
        x = jnp.concatenate([inp_in, inp_out], axis=2)
        gi = x @ params["w_ih"].T + params["b_ih"]
        gh = h @ params["w_hh"].T + params["b_hh"]
        i_r, i_i, i_n = jnp.split(gi, 3, axis=2)
        h_r, h_i, h_n = jnp.split(gh, 3, axis=2)
        r = jax.nn.sigmoid(i_r + h_r)
        z = jax.nn.sigmoid(i_i + h_i)
        n = jnp.tanh(i_n + r * h_n)
        h = n + z * (h - n)
    return h


def init_params(key, n_node, hidden_size):
    """Deterministic uniform(-stdv, stdv) init, matching reset_parameters()."""
    stdv = 1.0 / math.sqrt(hidden_size)
    H = hidden_size
    shapes = {
        "embedding": (n_node, H),
        "w_ih": (3 * H, 2 * H),
        "w_hh": (3 * H, H),
        "b_ih": (3 * H,),
        "b_hh": (3 * H,),
        "b_iah": (H,),
        "b_oah": (H,),
        "w_edge_in": (H, H),
        "b_edge_in": (H,),
        "w_edge_out": (H, H),
        "b_edge_out": (H,),
    }
    params = {}
    keys = jax.random.split(key, len(shapes))
    for k, (name, shp) in zip(keys, sorted(shapes.items())):
        params[name] = jax.random.uniform(
            k, shp, dtype=jnp.float32, minval=-stdv, maxval=stdv)
    return params


if __name__ == "__main__":
    # Small shapes consistent with the module: batch=2, seq=8, hidden=32.
    B, S, H = 2, 8, 32
    n_node = 50
    step = 1

    key = jax.random.PRNGKey(0)
    k_params, k_inputs, k_A = jax.random.split(key, 3)

    params = init_params(k_params, n_node, H)
    inputs = jax.random.randint(k_inputs, (B, S), 0, n_node, dtype=jnp.int32)
    A = jax.random.uniform(k_A, (B, S, 2 * S), dtype=jnp.float32)

    out = session_graph_forward(inputs, A, params, step=step)
    out = jax.block_until_ready(out)

    ref = reference_forward(inputs, A, params, step=step)
    assert out.shape == (B, S, H)
    # bf16 MXU matmuls (f32 accumulation) -> loosened tolerance vs f32 reference.
    assert jnp.allclose(out, ref, atol=2e-2, rtol=2e-2)

    print("KERNEL_OK")
</pallas_src>

<mosaic_0001>
module attributes {stable_mosaic.version = 11 : i64} {
  func.func @kernel(%arg0: i32, %arg1: memref<2x8x8xf32, #tpu.memory_space<vmem>>, %arg2: memref<2x8x8xf32, #tpu.memory_space<vmem>>, %arg3: memref<2x8x128xf32, #tpu.memory_space<vmem>>, %arg4: memref<128x256xbf16, #tpu.memory_space<vmem>>, %arg5: memref<1x256xf32, #tpu.memory_space<vmem>>, %arg6: memref<128x384xbf16, #tpu.memory_space<vmem>>, %arg7: memref<128x384xbf16, #tpu.memory_space<vmem>>, %arg8: memref<1x384xf32, #tpu.memory_space<vmem>>, %arg9: memref<128x384xbf16, #tpu.memory_space<vmem>>, %arg10: memref<1x384xf32, #tpu.memory_space<vmem>>, %arg11: memref<2x8x128xf32, #tpu.memory_space<vmem>>) attributes {dimension_semantics = [#tpu.dimension_semantics<parallel>], iteration_bounds = array<i64: 1>, scalar_prefetch = 0 : i64, scratch_operands = 0 : i64, tpu.core_type = #tpu.core_type<tc>, window_params = [{transform_indices = @transform_0, window_bounds = array<i64: 2, 8, 8>}, {transform_indices = @transform_1, window_bounds = array<i64: 2, 8, 8>}, {transform_indices = @transform_2, window_bounds = array<i64: 2, 8, 128>}, {pipeline_mode = #tpu.pipeline_mode<synchronous>, transform_indices = @transform_3, window_bounds = array<i64: 128, 256>}, {pipeline_mode = #tpu.pipeline_mode<synchronous>, transform_indices = @transform_4, window_bounds = array<i64: 1, 256>}, {pipeline_mode = #tpu.pipeline_mode<synchronous>, transform_indices = @transform_5, window_bounds = array<i64: 128, 384>}, {pipeline_mode = #tpu.pipeline_mode<synchronous>, transform_indices = @transform_6, window_bounds = array<i64: 128, 384>}, {pipeline_mode = #tpu.pipeline_mode<synchronous>, transform_indices = @transform_7, window_bounds = array<i64: 1, 384>}, {pipeline_mode = #tpu.pipeline_mode<synchronous>, transform_indices = @transform_8, window_bounds = array<i64: 128, 384>}, {pipeline_mode = #tpu.pipeline_mode<synchronous>, transform_indices = @transform_9, window_bounds = array<i64: 1, 384>}, {transform_indices = @transform_10, window_bounds = array<i64: 2, 8, 128>}]} {
    %c0 = arith.constant 0 : index
    %c0_0 = arith.constant 0 : index
    %c0_1 = arith.constant 0 : index
    %0 = vector.load %arg1[%c0, %c0_0, %c0_1] : memref<2x8x8xf32, #tpu.memory_space<vmem>>, vector<2x8x8xf32>
    %c0_2 = arith.constant 0 : index
    %c0_3 = arith.constant 0 : index
    %c0_4 = arith.constant 0 : index
    %1 = vector.load %arg2[%c0_2, %c0_3, %c0_4] : memref<2x8x8xf32, #tpu.memory_space<vmem>>, vector<2x8x8xf32>
    %c0_5 = arith.constant 0 : index
    %c0_6 = arith.constant 0 : index
    %2 = vector.load %arg4[%c0_5, %c0_6] : memref<128x256xbf16, #tpu.memory_space<vmem>>, vector<128x256xbf16>
    %c0_7 = arith.constant 0 : index
    %c0_8 = arith.constant 0 : index
    %3 = vector.load %arg5[%c0_7, %c0_8] : memref<1x256xf32, #tpu.memory_space<vmem>>, vector<1x256xf32>
    %c0_9 = arith.constant 0 : index
    %c0_10 = arith.constant 0 : index
    %4 = vector.load %arg6[%c0_9, %c0_10] : memref<128x384xbf16, #tpu.memory_space<vmem>>, vector<128x384xbf16>
    %c0_11 = arith.constant 0 : index
    %c0_12 = arith.constant 0 : index
    %5 = vector.load %arg7[%c0_11, %c0_12] : memref<128x384xbf16, #tpu.memory_space<vmem>>, vector<128x384xbf16>
    %c0_13 = arith.constant 0 : index
    %c0_14 = arith.constant 0 : index
    %6 = vector.load %arg8[%c0_13, %c0_14] : memref<1x384xf32, #tpu.memory_space<vmem>>, vector<1x384xf32>
    %c0_15 = arith.constant 0 : index
    %c0_16 = arith.constant 0 : index
    %7 = vector.load %arg9[%c0_15, %c0_16] : memref<128x384xbf16, #tpu.memory_space<vmem>>, vector<128x384xbf16>
    %c0_17 = arith.constant 0 : index
    %c0_18 = arith.constant 0 : index
    %8 = vector.load %arg10[%c0_17, %c0_18] : memref<1x384xf32, #tpu.memory_space<vmem>>, vector<1x384xf32>
    %c0_19 = arith.constant 0 : index
    %c0_20 = arith.constant 0 : index
    %c0_21 = arith.constant 0 : index
    %9 = vector.load %arg3[%c0_19, %c0_20, %c0_21] : memref<2x8x128xf32, #tpu.memory_space<vmem>>, vector<2x8x128xf32>
    %10 = vector.shape_cast %9 : vector<2x8x128xf32> to vector<16x128xf32>
    %11 = arith.truncf %10 : vector<16x128xf32> to vector<16x128xbf16>
    %cst = arith.constant dense<0.000000e+00> : vector<16x256xf32>
    %12 = tpu.matmul %11, %2, %cst {dimension_numbers = #tpu.dot_dimension_numbers<[1], [0], [0], [1], [0, 0, 1, 1], [], []>} : vector<16x128xbf16>, vector<128x256xbf16>, vector<16x256xf32> -> vector<16x256xf32>
    %13 = vector.broadcast %3 : vector<1x256xf32> to vector<16x256xf32>
    %14 = arith.addf %12, %13 : vector<16x256xf32>
    %15 = vector.extract_strided_slice %14 {offsets = [0, 0], sizes = [16, 128], strides = [1, 1]} : vector<16x256xf32> to vector<16x128xf32>
    %16 = vector.shape_cast %15 : vector<16x128xf32> to vector<2x8x128xf32>
    %17 = vector.extract_strided_slice %14 {offsets = [0, 128], sizes = [16, 128], strides = [1, 1]} : vector<16x256xf32> to vector<16x128xf32>
    %18 = vector.shape_cast %17 : vector<16x128xf32> to vector<2x8x128xf32>
    "tpu.trace_start"() <{level = 10 : i32, message = "bij,bjh->bih"}> : () -> ()
    %cst_22 = arith.constant dense<0.000000e+00> : vector<2x8x128xf32>
    %19 = tpu.matmul %0, %16, %cst_22 {dimension_numbers = #tpu.dot_dimension_numbers<[2], [1], [1], [2], [0, 0, 0, 1, 1, 2], [0], [0]>} : vector<2x8x8xf32>, vector<2x8x128xf32>, vector<2x8x128xf32> -> vector<2x8x128xf32>
    %cst_23 = arith.constant dense<0.000000e+00> : vector<2x8x128xf32>
    %20 = tpu.matmul %1, %18, %cst_23 {dimension_numbers = #tpu.dot_dimension_numbers<[2], [1], [1], [2], [0, 0, 0, 1, 1, 2], [0], [0]>} : vector<2x8x8xf32>, vector<2x8x128xf32>, vector<2x8x128xf32> -> vector<2x8x128xf32>
    "tpu.trace_stop"() : () -> ()
    %21 = vector.shape_cast %19 : vector<2x8x128xf32> to vector<16x128xf32>
    %22 = arith.truncf %21 : vector<16x128xf32> to vector<16x128xbf16>
    %23 = vector.shape_cast %20 : vector<2x8x128xf32> to vector<16x128xf32>
    %24 = arith.truncf %23 : vector<16x128xf32> to vector<16x128xbf16>
    %cst_24 = arith.constant dense<0.000000e+00> : vector<16x384xf32>
    %25 = tpu.matmul %22, %4, %cst_24 {dimension_numbers = #tpu.dot_dimension_numbers<[1], [0], [0], [1], [0, 0, 1, 1], [], []>} : vector<16x128xbf16>, vector<128x384xbf16>, vector<16x384xf32> -> vector<16x384xf32>
    %cst_25 = arith.constant dense<0.000000e+00> : vector<16x384xf32>
    %26 = tpu.matmul %24, %5, %cst_25 {dimension_numbers = #tpu.dot_dimension_numbers<[1], [0], [0], [1], [0, 0, 1, 1], [], []>} : vector<16x128xbf16>, vector<128x384xbf16>, vector<16x384xf32> -> vector<16x384xf32>
    %27 = arith.addf %25, %26 : vector<16x384xf32>
    %28 = vector.broadcast %6 : vector<1x384xf32> to vector<16x384xf32>
    %29 = arith.addf %27, %28 : vector<16x384xf32>
    %cst_26 = arith.constant dense<0.000000e+00> : vector<16x384xf32>
    %30 = tpu.matmul %11, %7, %cst_26 {dimension_numbers = #tpu.dot_dimension_numbers<[1], [0], [0], [1], [0, 0, 1, 1], [], []>} : vector<16x128xbf16>, vector<128x384xbf16>, vector<16x384xf32> -> vector<16x384xf32>
    %31 = vector.broadcast %8 : vector<1x384xf32> to vector<16x384xf32>
    %32 = arith.addf %30, %31 : vector<16x384xf32>
    %33 = vector.extract_strided_slice %29 {offsets = [0, 0], sizes = [16, 128], strides = [1, 1]} : vector<16x384xf32> to vector<16x128xf32>
    %34 = vector.extract_strided_slice %29 {offsets = [0, 128], sizes = [16, 128], strides = [1, 1]} : vector<16x384xf32> to vector<16x128xf32>
    %35 = vector.extract_strided_slice %29 {offsets = [0, 256], sizes = [16, 128], strides = [1, 1]} : vector<16x384xf32> to vector<16x128xf32>
    %36 = vector.extract_strided_slice %32 {offsets = [0, 0], sizes = [16, 128], strides = [1, 1]} : vector<16x384xf32> to vector<16x128xf32>
    %37 = vector.extract_strided_slice %32 {offsets = [0, 128], sizes = [16, 128], strides = [1, 1]} : vector<16x384xf32> to vector<16x128xf32>
    %38 = vector.extract_strided_slice %32 {offsets = [0, 256], sizes = [16, 128], strides = [1, 1]} : vector<16x384xf32> to vector<16x128xf32>
    %39 = arith.addf %33, %36 : vector<16x128xf32>
    %40 = arith.negf %39 : vector<16x128xf32>
    %41 = math.exp %40 : vector<16x128xf32>
    %cst_27 = arith.constant 1.000000e+00 : f32
    %42 = vector.broadcast %cst_27 : f32 to vector<16x128xf32>
    %43 = arith.addf %42, %41 : vector<16x128xf32>
    %44 = arith.divf %42, %43 : vector<16x128xf32>
    %45 = arith.addf %34, %37 : vector<16x128xf32>
    %46 = arith.negf %45 : vector<16x128xf32>
    %47 = math.exp %46 : vector<16x128xf32>
    %cst_28 = arith.constant 1.000000e+00 : f32
    %48 = vector.broadcast %cst_28 : f32 to vector<16x128xf32>
    %49 = arith.addf %48, %47 : vector<16x128xf32>
    %50 = arith.divf %48, %49 : vector<16x128xf32>
    %51 = arith.mulf %44, %38 : vector<16x128xf32>
    %52 = arith.addf %35, %51 : vector<16x128xf32>
    %53 = math.tanh %52 : vector<16x128xf32>
    %54 = arith.subf %10, %53 : vector<16x128xf32>
    %55 = arith.mulf %50, %54 : vector<16x128xf32>
    %56 = arith.addf %53, %55 : vector<16x128xf32>
    %57 = vector.shape_cast %56 : vector<16x128xf32> to vector<2x8x128xf32>
    %c0_29 = arith.constant 0 : index
    %c0_30 = arith.constant 0 : index
    %c0_31 = arith.constant 0 : index
    %58 = vector.load %arg11[%c0_29, %c0_30, %c0_31] : memref<2x8x128xf32, #tpu.memory_space<vmem>>, vector<2x8x128xf32>
    tpu.vector_store %arg11[%c0_29, %c0_30, %c0_31], %57 {strides = array<i32>} : memref<2x8x128xf32, #tpu.memory_space<vmem>>, vector<2x8x128xf32>,
    return
  }
  func.func @transform_0(%arg0: i32) -> (i32, i32, i32) {
    %c0_i32 = arith.constant 0 : i32
    %c0_i32_0 = arith.constant 0 : i32
    %c0_i32_1 = arith.constant 0 : i32
    return %arg0, %c0_i32, %c0_i32_0 : i32, i32, i32
  }
  func.func @transform_1(%arg0: i32) -> (i32, i32, i32) {
    %c0_i32 = arith.constant 0 : i32
    %c0_i32_0 = arith.constant 0 : i32
    %c0_i32_1 = arith.constant 0 : i32
    return %arg0, %c0_i32, %c0_i32_0 : i32, i32, i32
  }
  func.func @transform_2(%arg0: i32) -> (i32, i32, i32) {
    %c0_i32 = arith.constant 0 : i32
    %c0_i32_0 = arith.constant 0 : i32
    %c0_i32_1 = arith.constant 0 : i32
    return %arg0, %c0_i32, %c0_i32_0 : i32, i32, i32
  }
  func.func @transform_3(%arg0: i32) -> (i32, i32) {
    %c0_i32 = arith.constant 0 : i32
    %c0_i32_0 = arith.constant 0 : i32
    %c0_i32_1 = arith.constant 0 : i32
    return %c0_i32, %c0_i32_0 : i32, i32
  }
  func.func @transform_4(%arg0: i32) -> (i32, i32) {
    %c0_i32 = arith.constant 0 : i32
    %c0_i32_0 = arith.constant 0 : i32
    %c0_i32_1 = arith.constant 0 : i32
    return %c0_i32, %c0_i32_0 : i32, i32
  }
  func.func @transform_5(%arg0: i32) -> (i32, i32) {
    %c0_i32 = arith.constant 0 : i32
    %c0_i32_0 = arith.constant 0 : i32
    %c0_i32_1 = arith.constant 0 : i32
    return %c0_i32, %c0_i32_0 : i32, i32
  }
  func.func @transform_6(%arg0: i32) -> (i32, i32) {
    %c0_i32 = arith.constant 0 : i32
    %c0_i32_0 = arith.constant 0 : i32
    %c0_i32_1 = arith.constant 0 : i32
    return %c0_i32, %c0_i32_0 : i32, i32
  }
  func.func @transform_7(%arg0: i32) -> (i32, i32) {
    %c0_i32 = arith.constant 0 : i32
    %c0_i32_0 = arith.constant 0 : i32
    %c0_i32_1 = arith.constant 0 : i32
    return %c0_i32, %c0_i32_0 : i32, i32
  }
  func.func @transform_8(%arg0: i32) -> (i32, i32) {
    %c0_i32 = arith.constant 0 : i32
    %c0_i32_0 = arith.constant 0 : i32
    %c0_i32_1 = arith.constant 0 : i32
    return %c0_i32, %c0_i32_0 : i32, i32
  }
  func.func @transform_9(%arg0: i32) -> (i32, i32) {
    %c0_i32 = arith.constant 0 : i32
    %c0_i32_0 = arith.constant 0 : i32
    %c0_i32_1 = arith.constant 0 : i32
    return %c0_i32, %c0_i32_0 : i32, i32
  }
  func.func @transform_10(%arg0: i32) -> (i32, i32, i32) {
    %c0_i32 = arith.constant 0 : i32
    %c0_i32_0 = arith.constant 0 : i32
    %c0_i32_1 = arith.constant 0 : i32
    return %arg0, %c0_i32, %c0_i32_0 : i32, i32, i32
  }
}

</mosaic_0001>

<llo_original>
// kernel: tpu_custom_call.1
$region0: #{tpu_custom_call.1}
  #allocation0 [shape = 'u32[]', space=smem, size = 0x4, offset = 0x4, fixed_abs, tag = 'smem constant byte address 0x4 - core index']
  #allocation1 [shape = 'u32[144,128]{1,0:T(1,128)}', space=vmem, size = 0x12000, scoped, tag = 'internal scratch']
  %s0 = inlined_call_operand.hbm [shape: f32[2,8,8], index: 0, kind: input, shape index: {}]
  %s1 = inlined_call_operand.hbm [shape: f32[2,8,8], index: 1, kind: input, shape index: {}]
  %s2 = inlined_call_operand.hbm [shape: f32[2,8,128], index: 2, kind: input, shape index: {}]
  %s3 = inlined_call_operand.hbm [shape: bf16[128,256], index: 3, kind: input, shape index: {}]
  %s4 = inlined_call_operand.hbm [shape: f32[1,256], index: 4, kind: input, shape index: {}]
  %s5 = inlined_call_operand.hbm [shape: bf16[128,384], index: 5, kind: input, shape index: {}]
  %s6 = inlined_call_operand.hbm [shape: bf16[128,384], index: 6, kind: input, shape index: {}]
  %s7 = inlined_call_operand.vmem [shape: f32[1,384], index: 7, kind: input, shape index: {}]
  %s8 = inlined_call_operand.hbm [shape: bf16[128,384], index: 8, kind: input, shape index: {}]
  %s9 = inlined_call_operand.vmem [shape: f32[1,384], index: 9, kind: input, shape index: {}]
  %s10 = inlined_call_operand.hbm [shape: f32[2,8,128], index: 10, kind: output, shape index: {}]
  %s11 = sld [smem:[#allocation0]]
  $region82: #{tpu_custom_call.1} parent=0
    _
  %s13 = ssub.s32 1, %s11
  %s14 = scalar_select 0, %s13, %s11
  $region1: #{tpu_custom_call.1} parent=0
    #allocation2 [shape = 'u8[8192]{0}', space=vmem, size = 0x2000, scoped, tag = 'input window, operand 0, single buffered']
    #allocation3 [shape = 's32[1]{0}', space=sflag, size = 0x4, scoped, tag = 'scoped memory for tpu_custom_call.1']
    #allocation4 [shape = 's32[1]{0}', space=sflag, size = 0x4, scoped, tag = 'scoped memory for tpu_custom_call.1']
    #allocation5 [shape = 'u8[8192]{0}', space=vmem, size = 0x2000, scoped, tag = 'input window, operand 1, single buffered']
    #allocation6 [shape = 's32[1]{0}', space=sflag, size = 0x4, scoped, tag = 'scoped memory for tpu_custom_call.1']
    #allocation7 [shape = 'u8[8192]{0}', space=vmem, size = 0x2000, scoped, tag = 'input window, operand 2, single buffered']
    #allocation8 [shape = 'u8[65536]{0}', space=vmem, size = 0x10000, scoped, tag = 'input window, operand 3, single buffered']
    #allocation9 [shape = 's32[1]{0}', space=sflag, size = 0x4, scoped, tag = 'scoped memory for tpu_custom_call.1']
    #allocation10 [shape = 'u8[1024]{0}', space=vmem, size = 0x400, scoped, tag = 'input window, operand 4, single buffered']
    #allocation11 [shape = 'u8[98304]{0}', space=vmem, size = 0x18000, scoped, tag = 'input window, operand 5, single buffered']
    #allocation12 [shape = 's32[1]{0}', space=sflag, size = 0x4, scoped, tag = 'scoped memory for tpu_custom_call.1']
    #allocation13 [shape = 'u8[98304]{0}', space=vmem, size = 0x18000, scoped, tag = 'input window, operand 6, single buffered']
    #allocation14 [shape = 'u8[98304]{0}', space=vmem, size = 0x18000, scoped, tag = 'input window, operand 8, single buffered']
    #allocation15 [shape = 's32[1]{0}', space=sflag, size = 0x4, scoped, tag = 'scoped memory for tpu_custom_call.1']
    #allocation16 [shape = 'u8[8192]{0}', space=vmem, size = 0x2000, scoped, tag = 'output window, operand 0, single buffered']
    %15 = vsyncpa [#allocation3], 0
    %16 = vsyncpa [#allocation6], 0
    %17 = vsyncpa [#allocation9], 0
    %18 = vsyncpa [#allocation12], 0
    %19 = vsyncpa [#allocation15], 0
    %20 = vsyncpa [#allocation4], 0
    // Predicated region
    $region2: #{tpu_custom_call.1} parent=1 // pred_check
      _
    $region3: #{tpu_custom_call.1} parent=1 // pred_check_branch
      %22 = sbr.rel (0) target = $region5
    $region4: #{tpu_custom_call.1} parent=1 // pred_region
      %s24 = ssub.s32 256, 256
      %25 = vsyncadd [#allocation3], %s24
      %s26 = sshll.u32 [#allocation2], 4
      %s27 = int_to_ptr.vmem [resolvable:$true] %s26
      %32 = dma.hbm_to_vmem [thread:$0]  %s0, 256, %s27, [#allocation3], 128, 128, 8
    $region5: #{tpu_custom_call.1} parent=1 // pred_fallthru
      _
    // Predicated region
    $region6: #{tpu_custom_call.1} parent=1 // pred_check
      _
    $region7: #{tpu_custom_call.1} parent=1 // pred_check_branch
      %34 = sbr.rel (0) target = $region9
    $region8: #{tpu_custom_call.1} parent=1 // pred_region
      %s36 = ssub.s32 256, 256
      %37 = vsyncadd [#allocation6], %s36
      %s38 = sshll.u32 [#allocation5], 4
      %s39 = int_to_ptr.vmem [resolvable:$true] %s38
      %44 = dma.hbm_to_vmem [thread:$0]  %s1, 256, %s39, [#allocation6], 128, 128, 8
    $region9: #{tpu_custom_call.1} parent=1 // pred_fallthru
      _
    // Predicated region
    $region10: #{tpu_custom_call.1} parent=1 // pred_check
      _
    $region11: #{tpu_custom_call.1} parent=1 // pred_check_branch
      %46 = sbr.rel (0) target = $region13
    $region12: #{tpu_custom_call.1} parent=1 // pred_region
      %s48 = ssub.s32 256, 256
      %49 = vsyncadd [#allocation6], %s48
      %s50 = sshll.u32 [#allocation7], 4
      %s51 = int_to_ptr.vmem [resolvable:$true] %s50
      %56 = dma.hbm_to_vmem [thread:$0]  %s2, 256, %s51, [#allocation6], 128, 128, 8
    $region13: #{tpu_custom_call.1} parent=1 // pred_fallthru
      _
    // Predicated region
    $region14: #{tpu_custom_call.1} parent=1 // pred_check
      _
    $region15: #{tpu_custom_call.1} parent=1 // pred_check_branch
      %58 = sbr.rel (0) target = $region17
    $region16: #{tpu_custom_call.1} parent=1 // pred_region
      %s60 = ssub.s32 2048, 2048
      %61 = vsyncadd [#allocation9], %s60
      %s62 = sshll.u32 [#allocation8], 4
      %s63 = int_to_ptr.vmem [resolvable:$true] %s62
      %68 = dma.hbm_to_vmem [thread:$0]  %s3, 2048, %s63, [#allocation9], 128, 128, 8
    $region17: #{tpu_custom_call.1} parent=1 // pred_fallthru
      _
    // Predicated region
    $region18: #{tpu_custom_call.1} parent=1 // pred_check
      _
    $region19: #{tpu_custom_call.1} parent=1 // pred_check_branch
      %70 = sbr.rel (0) target = $region21
    $region20: #{tpu_custom_call.1} parent=1 // pred_region
      %s72 = ssub.s32 32, 32
      %73 = vsyncadd [#allocation9], %s72
      %s75 = sshll.u32 [#allocation10], 4
      %s76 = int_to_ptr.vmem [resolvable:$true] %s75
      %78 = dma.hbm_to_vmem [thread:$0]  %s4, 32, %s76, [#allocation9]
    $region21: #{tpu_custom_call.1} parent=1 // pred_fallthru
      _
    // Predicated region
    $region22: #{tpu_custom_call.1} parent=1 // pred_check
      _
    $region23: #{tpu_custom_call.1} parent=1 // pred_check_branch
      %80 = sbr.rel (0) target = $region25
    $region24: #{tpu_custom_call.1} parent=1 // pred_region
      %s82 = ssub.s32 3072, 3072
      %83 = vsyncadd [#allocation12], %s82
      %s84 = sshll.u32 [#allocation11], 4
      %s85 = int_to_ptr.vmem [resolvable:$true] %s84
      %90 = dma.hbm_to_vmem [thread:$0]  %s5, 3072, %s85, [#allocation12], 192, 192, 12
    $region25: #{tpu_custom_call.1} parent=1 // pred_fallthru
      _
    // Predicated region
    $region26: #{tpu_custom_call.1} parent=1 // pred_check
      _
    $region27: #{tpu_custom_call.1} parent=1 // pred_check_branch
      %92 = sbr.rel (0) target = $region29
    $region28: #{tpu_custom_call.1} parent=1 // pred_region
      %s94 = ssub.s32 3072, 3072
      %95 = vsyncadd [#allocation12], %s94
      %s96 = sshll.u32 [#allocation13], 4
      %s97 = int_to_ptr.vmem [resolvable:$true] %s96
      %102 = dma.hbm_to_vmem [thread:$0]  %s6, 3072, %s97, [#allocation12], 192, 192, 12
    $region29: #{tpu_custom_call.1} parent=1 // pred_fallthru
      _
    // Predicated region
    $region30: #{tpu_custom_call.1} parent=1 // pred_check
      _
    $region31: #{tpu_custom_call.1} parent=1 // pred_check_branch
      %104 = sbr.rel (0) target = $region33
    $region32: #{tpu_custom_call.1} parent=1 // pred_region
      _
    $region33: #{tpu_custom_call.1} parent=1 // pred_fallthru
      _
    // Predicated region
    $region34: #{tpu_custom_call.1} parent=1 // pred_check
      _
    $region35: #{tpu_custom_call.1} parent=1 // pred_check_branch
      %106 = sbr.rel (0) target = $region37
    $region36: #{tpu_custom_call.1} parent=1 // pred_region
      %s108 = ssub.s32 3072, 3072
      %109 = vsyncadd [#allocation15], %s108
      %s110 = sshll.u32 [#allocation14], 4
      %s111 = int_to_ptr.vmem [resolvable:$true] %s110
      %116 = dma.hbm_to_vmem [thread:$0]  %s8, 3072, %s111, [#allocation15], 192, 192, 12
    $region37: #{tpu_custom_call.1} parent=1 // pred_fallthru
      _
    // Predicated region
    $region38: #{tpu_custom_call.1} parent=1 // pred_check
      _
    $region39: #{tpu_custom_call.1} parent=1 // pred_check_branch
      %118 = sbr.rel (0) target = $region41
    $region40: #{tpu_custom_call.1} parent=1 // pred_region
      _
    $region41: #{tpu_custom_call.1} parent=1 // pred_fallthru
      _
    // Predicated region
    $region42: #{tpu_custom_call.1} parent=1 // pred_check
      _
    $region43: #{tpu_custom_call.1} parent=1 // pred_check_branch
      %120 = sbr.rel (0) target = $region45
    $region44: #{tpu_custom_call.1} parent=1 // pred_region
      %121 = dma.done [#allocation3], 256
    $region45: #{tpu_custom_call.1} parent=1 // pred_fallthru
      _
    // Predicated region
    $region46: #{tpu_custom_call.1} parent=1 // pred_check
      _
    $region47: #{tpu_custom_call.1} parent=1 // pred_check_branch
      %123 = sbr.rel (0) target = $region49
    $region48: #{tpu_custom_call.1} parent=1 // pred_region
      %124 = dma.done [#allocation6], 256
    $region49: #{tpu_custom_call.1} parent=1 // pred_fallthru
      _
    // Predicated region
    $region50: #{tpu_custom_call.1} parent=1 // pred_check
      _
    $region51: #{tpu_custom_call.1} parent=1 // pred_check_branch
      %126 = sbr.rel (0) target = $region53
    $region52: #{tpu_custom_call.1} parent=1 // pred_region
      %127 = dma.done [#allocation6], 256
    $region53: #{tpu_custom_call.1} parent=1 // pred_fallthru
      _
    // Predicated region
    $region54: #{tpu_custom_call.1} parent=1 // pred_check
      _
    $region55: #{tpu_custom_call.1} parent=1 // pred_check_branch
      %129 = sbr.rel (0) target = $region57
    $region56: #{tpu_custom_call.1} parent=1 // pred_region
      %130 = dma.done [#allocation9], 2048
    $region57: #{tpu_custom_call.1} parent=1 // pred_fallthru
      _
    // Predicated region
    $region58: #{tpu_custom_call.1} parent=1 // pred_check
      _
    $region59: #{tpu_custom_call.1} parent=1 // pred_check_branch
      %132 = sbr.rel (0) target = $region61
    $region60: #{tpu_custom_call.1} parent=1 // pred_region
      %133 = dma.done [#allocation9], 32
    $region61: #{tpu_custom_call.1} parent=1 // pred_fallthru
      _
    // Predicated region
    $region62: #{tpu_custom_call.1} parent=1 // pred_check
      _
    $region63: #{tpu_custom_call.1} parent=1 // pred_check_branch
      %135 = sbr.rel (0) target = $region65
    $region64: #{tpu_custom_call.1} parent=1 // pred_region
      %136 = dma.done [#allocation12], 3072
    $region65: #{tpu_custom_call.1} parent=1 // pred_fallthru
      _
    // Predicated region
    $region66: #{tpu_custom_call.1} parent=1 // pred_check
      _
    $region67: #{tpu_custom_call.1} parent=1 // pred_check_branch
      %138 = sbr.rel (0) target = $region69
    $region68: #{tpu_custom_call.1} parent=1 // pred_region
      %139 = dma.done [#allocation12], 3072
    $region69: #{tpu_custom_call.1} parent=1 // pred_fallthru
      _
    // Predicated region
    $region70: #{tpu_custom_call.1} parent=1 // pred_check
      _
    $region71: #{tpu_custom_call.1} parent=1 // pred_check_branch
      %141 = sbr.rel (0) target = $region73
    $region72: #{tpu_custom_call.1} parent=1 // pred_region
      %142 = dma.done [#allocation15], 3072
    $region73: #{tpu_custom_call.1} parent=1 // pred_fallthru
      _
    %v144 = vld [vmem:[#allocation2] sm:$0xff]
    %v145 = vld [vmem:[#allocation2 + $0x8] sm:$0xff]
    %v146 = vld [vmem:[#allocation5] sm:$0xff]
    %v147 = vld [vmem:[#allocation5 + $0x8] sm:$0xff]
    %v148 = vld [vmem:[#allocation8] sm:$0xff]
    %v149 = vld [vmem:[#allocation8 + $0x8] sm:$0xff]
    %v150 = vld [vmem:[#allocation8 + $0x10] sm:$0xff]
    %v151 = vld [vmem:[#allocation8 + $0x18] sm:$0xff]
    %v152 = vld [vmem:[#allocation8 + $0x20] sm:$0xff]
    %v153 = vld [vmem:[#allocation8 + $0x28] sm:$0xff]
    %v154 = vld [vmem:[#allocation8 + $0x30] sm:$0xff]
    %v155 = vld [vmem:[#allocation8 + $0x38] sm:$0xff]
    %v156 = vld [vmem:[#allocation8 + $0x40] sm:$0xff]
    %v157 = vld [vmem:[#allocation8 + $0x48] sm:$0xff]
    %v158 = vld [vmem:[#allocation8 + $0x50] sm:$0xff]
    %v159 = vld [vmem:[#allocation8 + $0x58] sm:$0xff]
    %v160 = vld [vmem:[#allocation8 + $0x60] sm:$0xff]
    %v161 = vld [vmem:[#allocation8 + $0x68] sm:$0xff]
    %v162 = vld [vmem:[#allocation8 + $0x70] sm:$0xff]
    %v163 = vld [vmem:[#allocation8 + $0x78] sm:$0xff]
    %v164 = vld [vmem:[#allocation10] sm:$0x3]
    %v165 = vld [vmem:[#allocation11] sm:$0xff]
    %v166 = vld [vmem:[#allocation11 + $0x8] sm:$0xf]
    %v167 = vld [vmem:[#allocation11 + $0xc] sm:$0xff]
    %v168 = vld [vmem:[#allocation11 + $0x14] sm:$0xf]
    %v169 = vld [vmem:[#allocation11 + $0x18] sm:$0xff]
    %v170 = vld [vmem:[#allocation11 + $0x20] sm:$0xf]
    %v171 = vld [vmem:[#allocation11 + $0x24] sm:$0xff]
    %v172 = vld [vmem:[#allocation11 + $0x2c] sm:$0xf]
    %v173 = vld [vmem:[#allocation11 + $0x30] sm:$0xff]
    %v174 = vld [vmem:[#allocation11 + $0x38] sm:$0xf]
    %v175 = vld [vmem:[#allocation11 + $0x3c] sm:$0xff]
    %v176 = vld [vmem:[#allocation11 + $0x44] sm:$0xf]
    %v177 = vld [vmem:[#allocation11 + $0x48] sm:$0xff]
    %v178 = vld [vmem:[#allocation11 + $0x50] sm:$0xf]
    %v179 = vld [vmem:[#allocation11 + $0x54] sm:$0xff]
    %v180 = vld [vmem:[#allocation11 + $0x5c] sm:$0xf]
    %v181 = vld [vmem:[#allocation11 + $0x60] sm:$0xff]
    %v182 = vld [vmem:[#allocation11 + $0x68] sm:$0xf]
    %v183 = vld [vmem:[#allocation11 + $0x6c] sm:$0xff]
    %v184 = vld [vmem:[#allocation11 + $0x74] sm:$0xf]
    %v185 = vld [vmem:[#allocation11 + $0x78] sm:$0xff]
    %v186 = vld [vmem:[#allocation11 + $0x80] sm:$0xf]
    %v187 = vld [vmem:[#allocation11 + $0x84] sm:$0xff]
    %v188 = vld [vmem:[#allocation11 + $0x8c] sm:$0xf]
    %v189 = vld [vmem:[#allocation11 + $0x90] sm:$0xff]
    %v190 = vld [vmem:[#allocation11 + $0x98] sm:$0xf]
    %v191 = vld [vmem:[#allocation11 + $0x9c] sm:$0xff]
    %v192 = vld [vmem:[#allocation11 + $0xa4] sm:$0xf]
    %v193 = vld [vmem:[#allocation11 + $0xa8] sm:$0xff]
    %v194 = vld [vmem:[#allocation11 + $0xb0] sm:$0xf]
    %v195 = vld [vmem:[#allocation11 + $0xb4] sm:$0xff]
    %v196 = vld [vmem:[#allocation11 + $0xbc] sm:$0xf]
    %v197 = vld [vmem:[#allocation13] sm:$0xff]
    %v198 = vld [vmem:[#allocation13 + $0x8] sm:$0xf]
    %v199 = vld [vmem:[#allocation13 + $0xc] sm:$0xff]
    %v200 = vld [vmem:[#allocation13 + $0x14] sm:$0xf]
    %v201 = vld [vmem:[#allocation13 + $0x18] sm:$0xff]
    %v202 = vld [vmem:[#allocation13 + $0x20] sm:$0xf]
    %v203 = vld [vmem:[#allocation13 + $0x24] sm:$0xff]
    %v204 = vld [vmem:[#allocation13 + $0x2c] sm:$0xf]
    %v205 = vld [vmem:[#allocation13 + $0x30] sm:$0xff]
    %v206 = vld [vmem:[#allocation13 + $0x38] sm:$0xf]
    %v207 = vld [vmem:[#allocation13 + $0x3c] sm:$0xff]
    %v208 = vld [vmem:[#allocation13 + $0x44] sm:$0xf]
    %v209 = vld [vmem:[#allocation13 + $0x48] sm:$0xff]
    %v210 = vld [vmem:[#allocation13 + $0x50] sm:$0xf]
    %v211 = vld [vmem:[#allocation13 + $0x54] sm:$0xff]
    %v212 = vld [vmem:[#allocation13 + $0x5c] sm:$0xf]
    %v213 = vld [vmem:[#allocation13 + $0x60] sm:$0xff]
    %v214 = vld [vmem:[#allocation13 + $0x68] sm:$0xf]
    %v215 = vld [vmem:[#allocation13 + $0x6c] sm:$0xff]
    %v216 = vld [vmem:[#allocation13 + $0x74] sm:$0xf]
    %v217 = vld [vmem:[#allocation13 + $0x78] sm:$0xff]
    %v218 = vld [vmem:[#allocation13 + $0x80] sm:$0xf]
    %v219 = vld [vmem:[#allocation13 + $0x84] sm:$0xff]
    %v220 = vld [vmem:[#allocation13 + $0x8c] sm:$0xf]
    %v221 = vld [vmem:[#allocation13 + $0x90] sm:$0xff]
    %v222 = vld [vmem:[#allocation13 + $0x98] sm:$0xf]
    %v223 = vld [vmem:[#allocation13 + $0x9c] sm:$0xff]
    %v224 = vld [vmem:[#allocation13 + $0xa4] sm:$0xf]
    %v225 = vld [vmem:[#allocation13 + $0xa8] sm:$0xff]
    %v226 = vld [vmem:[#allocation13 + $0xb0] sm:$0xf]
    %v227 = vld [vmem:[#allocation13 + $0xb4] sm:$0xff]
    %v228 = vld [vmem:[#allocation13 + $0xbc] sm:$0xf]
    %v229 = vld [vmem:[%s7] sm:$0x7]
    %v230 = vld [vmem:[#allocation14] sm:$0xff]
    %v231 = vld [vmem:[#allocation14 + $0x8] sm:$0xf]
    %v232 = vld [vmem:[#allocation14 + $0xc] sm:$0xff]
    %v233 = vld [vmem:[#allocation14 + $0x14] sm:$0xf]
    %v234 = vld [vmem:[#allocation14 + $0x18] sm:$0xff]
    %v235 = vld [vmem:[#allocation14 + $0x20] sm:$0xf]
    %v236 = vld [vmem:[#allocation14 + $0x24] sm:$0xff]
    %v237 = vld [vmem:[#allocation14 + $0x2c] sm:$0xf]
    %v238 = vld [vmem:[#allocation14 + $0x30] sm:$0xff]
    %v239 = vld [vmem:[#allocation14 + $0x38] sm:$0xf]
    %v240 = vld [vmem:[#allocation14 + $0x3c] sm:$0xff]
    %v241 = vld [vmem:[#allocation14 + $0x44] sm:$0xf]
    %v242 = vld [vmem:[#allocation14 + $0x48] sm:$0xff]
    %v243 = vld [vmem:[#allocation14 + $0x50] sm:$0xf]
    %v244 = vld [vmem:[#allocation14 + $0x54] sm:$0xff]
    %v245 = vld [vmem:[#allocation14 + $0x5c] sm:$0xf]
    %v246 = vld [vmem:[#allocation14 + $0x60] sm:$0xff]
    %v247 = vld [vmem:[#allocation14 + $0x68] sm:$0xf]
    %v248 = vld [vmem:[#allocation14 + $0x6c] sm:$0xff]
    %v249 = vld [vmem:[#allocation14 + $0x74] sm:$0xf]
    %v250 = vld [vmem:[#allocation14 + $0x78] sm:$0xff]
    %v251 = vld [vmem:[#allocation14 + $0x80] sm:$0xf]
    %v252 = vld [vmem:[#allocation14 + $0x84] sm:$0xff]
    %v253 = vld [vmem:[#allocation14 + $0x8c] sm:$0xf]
    %v254 = vld [vmem:[#allocation14 + $0x90] sm:$0xff]
    %v255 = vld [vmem:[#allocation14 + $0x98] sm:$0xf]
    %v256 = vld [vmem:[#allocation14 + $0x9c] sm:$0xff]
    %v257 = vld [vmem:[#allocation14 + $0xa4] sm:$0xf]
    %v258 = vld [vmem:[#allocation14 + $0xa8] sm:$0xff]
    %v259 = vld [vmem:[#allocation14 + $0xb0] sm:$0xf]
    %v260 = vld [vmem:[#allocation14 + $0xb4] sm:$0xff]
    %v261 = vld [vmem:[#allocation14 + $0xbc] sm:$0xf]
    %v262 = vld [vmem:[%s9] sm:$0x7]
    %v263 = vld [vmem:[#allocation7] sm:$0xff]
    %v264 = vld [vmem:[#allocation7 + $0x8] sm:$0xff]
    %v265 = vpack.c.bf16 %v264, %v263
    %v267 = vlaneseq
    %v268 = vshrl.u32 %v267, 7
    %v269 = vsub.s32 0, %v268
    %v270 = vrot.slane %v164, %v269
    %v271 = vlaneseq
    %v272 = vshrl.u32 %v271, 7
    %v273 = vsub.s32 1, %v272
    %v274 = vrot.slane %v164, %v273
    %v293 = vunpack.c.l.b16 %v148
    %v294 = vunpack.c.h.b16 %v148
    %v295 = vunpack.c.l.b16 %v149
    %v296 = vunpack.c.h.b16 %v149
    %v297 = vunpack.c.l.b16 %v150
    %v298 = vunpack.c.h.b16 %v150
    %v299 = vunpack.c.l.b16 %v151
    %v300 = vunpack.c.h.b16 %v151
    %v301 = vunpack.c.l.b16 %v152
    %v302 = vunpack.c.h.b16 %v152
    %v303 = vunpack.c.l.b16 %v153
    %v304 = vunpack.c.h.b16 %v153
    %v305 = vunpack.c.l.b16 %v154
    %v306 = vunpack.c.h.b16 %v154
    %v307 = vunpack.c.l.b16 %v155
    %v308 = vunpack.c.h.b16 %v155
    %v309 = vunpack.c.l.b16 %v156
    %v310 = vunpack.c.h.b16 %v156
    %v311 = vunpack.c.l.b16 %v157
    %v312 = vunpack.c.h.b16 %v157
    %v313 = vunpack.c.l.b16 %v158
    %v314 = vunpack.c.h.b16 %v158
    %v315 = vunpack.c.l.b16 %v159
    %v316 = vunpack.c.h.b16 %v159
    %v317 = vunpack.c.l.b16 %v160
    %v318 = vunpack.c.h.b16 %v160
    %v319 = vunpack.c.l.b16 %v161
    %v320 = vunpack.c.h.b16 %v161
    %v321 = vunpack.c.l.b16 %v162
    %v322 = vunpack.c.h.b16 %v162
    %v323 = vunpack.c.l.b16 %v163
    %v324 = vunpack.c.h.b16 %v163
    %v325 = vpack.c.b16 %v295, %v293
    %v326 = vpack.c.b16 %v296, %v294
    %v327 = vpack.c.b16 %v299, %v297
    %v328 = vpack.c.b16 %v300, %v298
    %v329 = vpack.c.b16 %v303, %v301
    %v330 = vpack.c.b16 %v304, %v302
    %v331 = vpack.c.b16 %v307, %v305
    %v332 = vpack.c.b16 %v308, %v306
    %v333 = vpack.c.b16 %v311, %v309
    %v334 = vpack.c.b16 %v312, %v310
    %v335 = vpack.c.b16 %v315, %v313
    %v336 = vpack.c.b16 %v316, %v314
    %v337 = vpack.c.b16 %v319, %v317
    %v338 = vpack.c.b16 %v320, %v318
    %v339 = vpack.c.b16 %v323, %v321
    %v340 = vpack.c.b16 %v324, %v322
    %357 = vmatprep.subr.bf16.mxu0 %v340
    %358 = vmatpush1.bf16.msra.mxu0 %v339
    %359 = vmatprep.subr.bf16.mxu0 %v338
    %360 = vmatpush1.bf16.msra.mxu0 %v337
    %361 = vmatprep.subr.bf16.mxu0 %v336
    %362 = vmatpush1.bf16.msra.mxu0 %v335
    %363 = vmatprep.subr.bf16.mxu0 %v334
    %364 = vmatpush1.bf16.msra.mxu0 %v333
    %365 = vmatprep.subr.bf16.mxu0 %v332
    %366 = vmatpush1.bf16.msra.mxu0 %v331
    %367 = vmatprep.subr.bf16.mxu0 %v330
    %368 = vmatpush1.bf16.msra.mxu0 %v329
    %369 = vmatprep.subr.bf16.mxu0 %v328
    %370 = vmatpush1.bf16.msra.mxu0 %v327
    %371 = vmatprep.subr.bf16.mxu0 %v326
    %372 = vmatpush1.bf16.msra.mxu0 %v325
    %373 = vmatprep.subr.bf16.mxu0 0
    %374 = vmatpush2.bf16.msra.mxu0 0
    %375 = vmatprep.subr.bf16.mxu0 0
    %376 = vmatpush2.bf16.msra.mxu0 0
    %377 = vmatprep.subr.bf16.mxu0 0
    %378 = vmatpush2.bf16.msra.mxu0 0
    %379 = vmatprep.subr.bf16.mxu0 0
    %380 = vmatpush2.bf16.msra.mxu0 0
    %381 = vmatprep.subr.bf16.mxu0 0
    %382 = vmatpush2.bf16.msra.mxu0 0
    %383 = vmatprep.subr.bf16.mxu0 0
    %384 = vmatpush2.bf16.msra.mxu0 0
    %385 = vmatprep.subr.bf16.mxu0 0
    %386 = vmatpush2.bf16.msra.mxu0 0
    %387 = vmatprep.subr.bf16.mxu0 0
    %388 = vmatpush2.bf16.msra.mxu0 0
    %389 = vmatprep.mubr.bf16.mxu0 0
    %390 = vmatmul.mubr.bf16.gmra.mxu0 %v265
    %v391 = vpop.f32.mrf.mxu0
    %v392 = vadd.f32 %v270, %v391
    %v393 = vpop.f32.mrf.mxu0
    %v394 = vadd.f32 %v274, %v393
    %v395 = vpop.f32.mrf.mxu0
    %v396 = vadd.f32 %v270, %v395
    %v397 = vpop.f32.mrf.mxu0
    %v398 = vadd.f32 %v274, %v397
    %399 = vdwg.mxu0
    %vm400 = vcmask 64512
    %v402 = vsel %vm400, %v144, 0
    %404 = vmatprep.subr.mxu0 0.0
    %405 = vmatpush1.msra.mxu0 0.0
    %406 = vmatprep.subr.mxu0 0.0
    %407 = vmatpush1.msra.mxu0 0.0
    %408 = vmatprep.subr.mxu0 0.0
    %409 = vmatpush1.msra.mxu0 0.0
    %410 = vmatprep.subr.mxu0 0.0
    %411 = vmatpush1.msra.mxu0 0.0
    %412 = vmatprep.subr.mxu0 0.0
    %413 = vmatpush1.msra.mxu0 0.0
    %414 = vmatprep.subr.mxu0 0.0
    %415 = vmatpush1.msra.mxu0 0.0
    %416 = vmatprep.subr.mxu0 0.0
    %417 = vmatpush1.msra.mxu0 0.0
    %418 = vmatprep.subr.mxu0 0.0
    %419 = vmatpush1.msra.mxu0 0.0
    %420 = vmatprep.subr.mxu0 0.0
    %421 = vmatpush1.msra.mxu0 0.0
    %422 = vmatprep.subr.mxu0 0.0
    %423 = vmatpush1.msra.mxu0 0.0
    %424 = vmatprep.subr.mxu0 0.0
    %425 = vmatpush1.msra.mxu0 0.0
    %426 = vmatprep.subr.mxu0 0.0
    %427 = vmatpush1.msra.mxu0 0.0
    %428 = vmatprep.subr.mxu0 0.0
    %429 = vmatpush1.msra.mxu0 0.0
    %430 = vmatprep.subr.mxu0 0.0
    %431 = vmatpush1.msra.mxu0 0.0
    %432 = vmatprep.subr.mxu0 0.0
    %433 = vmatpush1.msra.mxu0 0.0
    %434 = vmatprep.subr.mxu0 0.0
    %435 = vmatpush1.msra.mxu0 %v392
    %436 = vmatprep.subr.mxu0 0.0
    %437 = vmatpush2.msra.mxu0 0.0
    %438 = vmatprep.subr.mxu0 0.0
    %439 = vmatpush2.msra.mxu0 0.0
    %440 = vmatprep.subr.mxu0 0.0
    %441 = vmatpush2.msra.mxu0 0.0
    %442 = vmatprep.subr.mxu0 0.0
    %443 = vmatpush2.msra.mxu0 0.0
    %444 = vmatprep.subr.mxu0 0.0
    %445 = vmatpush2.msra.mxu0 0.0
    %446 = vmatprep.subr.mxu0 0.0
    %447 = vmatpush2.msra.mxu0 0.0
    %448 = vmatprep.subr.mxu0 0.0
    %449 = vmatpush2.msra.mxu0 0.0
    %450 = vmatprep.subr.mxu0 0.0
    %451 = vmatpush2.msra.mxu0 0.0
    %452 = vmatprep.subr.mxu0 0.0
    %453 = vmatpush2.msra.mxu0 0.0
    %454 = vmatprep.subr.mxu0 0.0
    %455 = vmatpush2.msra.mxu0 0.0
    %456 = vmatprep.subr.mxu0 0.0
    %457 = vmatpush2.msra.mxu0 0.0
    %458 = vmatprep.subr.mxu0 0.0
    %459 = vmatpush2.msra.mxu0 0.0
    %460 = vmatprep.subr.mxu0 0.0
    %461 = vmatpush2.msra.mxu0 0.0
    %462 = vmatprep.subr.mxu0 0.0
    %463 = vmatpush2.msra.mxu0 0.0
    %464 = vmatprep.subr.mxu0 0.0
    %465 = vmatpush2.msra.mxu0 0.0
    %466 = vmatprep.subr.mxu0 0.0
    %467 = vmatpush2.msra.mxu0 0.0
    %468 = vmatprep.mubr.f32.mxu0 0.0
    %469 = vmatmul.mubr.f32.gmra.mxu0 %v402
    %v470 = vpop.f32.mrf.mxu0
    %v471 = vadd.f32 0.0, %v470
    %v472 = vpop.f32.mrf.mxu0
    %473 = vdwg.mxu0
    %v475 = vsel %vm400, %v145, 0
    %477 = vmatprep.subr.mxu0 0.0
    %478 = vmatpush1.msra.mxu0 0.0
    %479 = vmatprep.subr.mxu0 0.0
    %480 = vmatpush1.msra.mxu0 0.0
    %481 = vmatprep.subr.mxu0 0.0
    %482 = vmatpush1.msra.mxu0 0.0
    %483 = vmatprep.subr.mxu0 0.0
    %484 = vmatpush1.msra.mxu0 0.0
    %485 = vmatprep.subr.mxu0 0.0
    %486 = vmatpush1.msra.mxu0 0.0
    %487 = vmatprep.subr.mxu0 0.0
    %488 = vmatpush1.msra.mxu0 0.0
    %489 = vmatprep.subr.mxu0 0.0
    %490 = vmatpush1.msra.mxu0 0.0
    %491 = vmatprep.subr.mxu0 0.0
    %492 = vmatpush1.msra.mxu0 0.0
    %493 = vmatprep.subr.mxu0 0.0
    %494 = vmatpush1.msra.mxu0 0.0
    %495 = vmatprep.subr.mxu0 0.0
    %496 = vmatpush1.msra.mxu0 0.0
    %497 = vmatprep.subr.mxu0 0.0
    %498 = vmatpush1.msra.mxu0 0.0
    %499 = vmatprep.subr.mxu0 0.0
    %500 = vmatpush1.msra.mxu0 0.0
    %501 = vmatprep.subr.mxu0 0.0
    %502 = vmatpush1.msra.mxu0 0.0
    %503 = vmatprep.subr.mxu0 0.0
    %504 = vmatpush1.msra.mxu0 0.0
    %505 = vmatprep.subr.mxu0 0.0
    %506 = vmatpush1.msra.mxu0 0.0
    %507 = vmatprep.subr.mxu0 0.0
    %508 = vmatpush1.msra.mxu0 %v396
    %509 = vmatprep.subr.mxu0 0.0
    %510 = vmatpush2.msra.mxu0 0.0
    %511 = vmatprep.subr.mxu0 0.0
    %512 = vmatpush2.msra.mxu0 0.0
    %513 = vmatprep.subr.mxu0 0.0
    %514 = vmatpush2.msra.mxu0 0.0
    %515 = vmatprep.subr.mxu0 0.0
    %516 = vmatpush2.msra.mxu0 0.0
    %517 = vmatprep.subr.mxu0 0.0
    %518 = vmatpush2.msra.mxu0 0.0
    %519 = vmatprep.subr.mxu0 0.0
    %520 = vmatpush2.msra.mxu0 0.0
    %521 = vmatprep.subr.mxu0 0.0
    %522 = vmatpush2.msra.mxu0 0.0
    %523 = vmatprep.subr.mxu0 0.0
    %524 = vmatpush2.msra.mxu0 0.0
    %525 = vmatprep.subr.mxu0 0.0
    %526 = vmatpush2.msra.mxu0 0.0
    %527 = vmatprep.subr.mxu0 0.0
    %528 = vmatpush2.msra.mxu0 0.0
    %529 = vmatprep.subr.mxu0 0.0
    %530 = vmatpush2.msra.mxu0 0.0
    %531 = vmatprep.subr.mxu0 0.0
    %532 = vmatpush2.msra.mxu0 0.0
    %533 = vmatprep.subr.mxu0 0.0
    %534 = vmatpush2.msra.mxu0 0.0
    %535 = vmatprep.subr.mxu0 0.0
    %536 = vmatpush2.msra.mxu0 0.0
    %537 = vmatprep.subr.mxu0 0.0
    %538 = vmatpush2.msra.mxu0 0.0
    %539 = vmatprep.subr.mxu0 0.0
    %540 = vmatpush2.msra.mxu0 0.0
    %541 = vmatprep.mubr.f32.mxu0 0.0
    %542 = vmatmul.mubr.f32.gmra.mxu0 %v475
    %v543 = vpop.f32.mrf.mxu0
    %v544 = vadd.f32 0.0, %v543
    %v545 = vpop.f32.mrf.mxu0
    %546 = vdwg.mxu0
    %v548 = vsel %vm400, %v146, 0
    %550 = vmatprep.subr.mxu0 0.0
    %551 = vmatpush1.msra.mxu0 0.0
    %552 = vmatprep.subr.mxu0 0.0
    %553 = vmatpush1.msra.mxu0 0.0
    %554 = vmatprep.subr.mxu0 0.0
    %555 = vmatpush1.msra.mxu0 0.0
    %556 = vmatprep.subr.mxu0 0.0
    %557 = vmatpush1.msra.mxu0 0.0
    %558 = vmatprep.subr.mxu0 0.0
    %559 = vmatpush1.msra.mxu0 0.0
    %560 = vmatprep.subr.mxu0 0.0
    %561 = vmatpush1.msra.mxu0 0.0
    %562 = vmatprep.subr.mxu0 0.0
    %563 = vmatpush1.msra.mxu0 0.0
    %564 = vmatprep.subr.mxu0 0.0
    %565 = vmatpush1.msra.mxu0 0.0
    %566 = vmatprep.subr.mxu0 0.0
    %567 = vmatpush1.msra.mxu0 0.0
    %568 = vmatprep.subr.mxu0 0.0
    %569 = vmatpush1.msra.mxu0 0.0
    %570 = vmatprep.subr.mxu0 0.0
    %571 = vmatpush1.msra.mxu0 0.0
    %572 = vmatprep.subr.mxu0 0.0
    %573 = vmatpush1.msra.mxu0 0.0
    %574 = vmatprep.subr.mxu0 0.0
    %575 = vmatpush1.msra.mxu0 0.0
    %576 = vmatprep.subr.mxu0 0.0
    %577 = vmatpush1.msra.mxu0 0.0
    %578 = vmatprep.subr.mxu0 0.0
    %579 = vmatpush1.msra.mxu0 0.0
    %580 = vmatprep.subr.mxu0 0.0
    %581 = vmatpush1.msra.mxu0 %v394
    %582 = vmatprep.subr.mxu0 0.0
    %583 = vmatpush2.msra.mxu0 0.0
    %584 = vmatprep.subr.mxu0 0.0
    %585 = vmatpush2.msra.mxu0 0.0
    %586 = vmatprep.subr.mxu0 0.0
    %587 = vmatpush2.msra.mxu0 0.0
    %588 = vmatprep.subr.mxu0 0.0
    %589 = vmatpush2.msra.mxu0 0.0
    %590 = vmatprep.subr.mxu0 0.0
    %591 = vmatpush2.msra.mxu0 0.0
    %592 = vmatprep.subr.mxu0 0.0
    %593 = vmatpush2.msra.mxu0 0.0
    %594 = vmatprep.subr.mxu0 0.0
    %595 = vmatpush2.msra.mxu0 0.0
    %596 = vmatprep.subr.mxu0 0.0
    %597 = vmatpush2.msra.mxu0 0.0
    %598 = vmatprep.subr.mxu0 0.0
    %599 = vmatpush2.msra.mxu0 0.0
    %600 = vmatprep.subr.mxu0 0.0
    %601 = vmatpush2.msra.mxu0 0.0
    %602 = vmatprep.subr.mxu0 0.0
    %603 = vmatpush2.msra.mxu0 0.0
    %604 = vmatprep.subr.mxu0 0.0
    %605 = vmatpush2.msra.mxu0 0.0
    %606 = vmatprep.subr.mxu0 0.0
    %607 = vmatpush2.msra.mxu0 0.0
    %608 = vmatprep.subr.mxu0 0.0
    %609 = vmatpush2.msra.mxu0 0.0
    %610 = vmatprep.subr.mxu0 0.0
    %611 = vmatpush2.msra.mxu0 0.0
    %612 = vmatprep.subr.mxu0 0.0
    %613 = vmatpush2.msra.mxu0 0.0
    %614 = vmatprep.mubr.f32.mxu0 0.0
    %615 = vmatmul.mubr.f32.gmra.mxu0 %v548
    %v616 = vpop.f32.mrf.mxu0
    %v617 = vadd.f32 0.0, %v616
    %v618 = vpop.f32.mrf.mxu0
    %619 = vdwg.mxu0
    %v621 = vsel %vm400, %v147, 0
    %623 = vmatprep.subr.mxu0 0.0
    %624 = vmatpush1.msra.mxu0 0.0
    %625 = vmatprep.subr.mxu0 0.0
    %626 = vmatpush1.msra.mxu0 0.0
    %627 = vmatprep.subr.mxu0 0.0
    %628 = vmatpush1.msra.mxu0 0.0
    %629 = vmatprep.subr.mxu0 0.0
    %630 = vmatpush1.msra.mxu0 0.0
    %631 = vmatprep.subr.mxu0 0.0
    %632 = vmatpush1.msra.mxu0 0.0
    %633 = vmatprep.subr.mxu0 0.0
    %634 = vmatpush1.msra.mxu0 0.0
    %635 = vmatprep.subr.mxu0 0.0
    %636 = vmatpush1.msra.mxu0 0.0
    %637 = vmatprep.subr.mxu0 0.0
    %638 = vmatpush1.msra.mxu0 0.0
    %639 = vmatprep.subr.mxu0 0.0
    %640 = vmatpush1.msra.mxu0 0.0
    %641 = vmatprep.subr.mxu0 0.0
    %642 = vmatpush1.msra.mxu0 0.0
    %643 = vmatprep.subr.mxu0 0.0
    %644 = vmatpush1.msra.mxu0 0.0
    %645 = vmatprep.subr.mxu0 0.0
    %646 = vmatpush1.msra.mxu0 0.0
    %647 = vmatprep.subr.mxu0 0.0
    %648 = vmatpush1.msra.mxu0 0.0
    %649 = vmatprep.subr.mxu0 0.0
    %650 = vmatpush1.msra.mxu0 0.0
    %651 = vmatprep.subr.mxu0 0.0
    %652 = vmatpush1.msra.mxu0 0.0
    %653 = vmatprep.subr.mxu0 0.0
    %654 = vmatpush1.msra.mxu0 %v398
    %655 = vmatprep.subr.mxu0 0.0
    %656 = vmatpush2.msra.mxu0 0.0
    %657 = vmatprep.subr.mxu0 0.0
    %658 = vmatpush2.msra.mxu0 0.0
    %659 = vmatprep.subr.mxu0 0.0
    %660 = vmatpush2.msra.mxu0 0.0
    %661 = vmatprep.subr.mxu0 0.0
    %662 = vmatpush2.msra.mxu0 0.0
    %663 = vmatprep.subr.mxu0 0.0
    %664 = vmatpush2.msra.mxu0 0.0
    %665 = vmatprep.subr.mxu0 0.0
    %666 = vmatpush2.msra.mxu0 0.0
    %667 = vmatprep.subr.mxu0 0.0
    %668 = vmatpush2.msra.mxu0 0.0
    %669 = vmatprep.subr.mxu0 0.0
    %670 = vmatpush2.msra.mxu0 0.0
    %671 = vmatprep.subr.mxu0 0.0
    %672 = vmatpush2.msra.mxu0 0.0
    %673 = vmatprep.subr.mxu0 0.0
    %674 = vmatpush2.msra.mxu0 0.0
    %675 = vmatprep.subr.mxu0 0.0
    %676 = vmatpush2.msra.mxu0 0.0
    %677 = vmatprep.subr.mxu0 0.0
    %678 = vmatpush2.msra.mxu0 0.0
    %679 = vmatprep.subr.mxu0 0.0
    %680 = vmatpush2.msra.mxu0 0.0
    %681 = vmatprep.subr.mxu0 0.0
    %682 = vmatpush2.msra.mxu0 0.0
    %683 = vmatprep.subr.mxu0 0.0
    %684 = vmatpush2.msra.mxu0 0.0
    %685 = vmatprep.subr.mxu0 0.0
    %686 = vmatpush2.msra.mxu0 0.0
    %687 = vmatprep.mubr.f32.mxu0 0.0
    %688 = vmatmul.mubr.f32.gmra.mxu0 %v621
    %v689 = vpop.f32.mrf.mxu0
    %v690 = vadd.f32 0.0, %v689
    %v691 = vpop.f32.mrf.mxu0
    %692 = vdwg.mxu0
    %v693 = vpack.c.bf16 %v544, %v471
    %v694 = vpack.c.bf16 %v690, %v617
    %v727 = vunpack.c.l.b16 %v197
    %v728 = vunpack.c.h.b16 %v197
    %v729 = vunpack.c.l.b16 %v198
    %v730 = vunpack.c.l.b16 %v199
    %v731 = vunpack.c.h.b16 %v199
    %v732 = vunpack.c.l.b16 %v200
    %v733 = vunpack.c.l.b16 %v201
    %v734 = vunpack.c.h.b16 %v201
    %v735 = vunpack.c.l.b16 %v202
    %v736 = vunpack.c.l.b16 %v203
    %v737 = vunpack.c.h.b16 %v203
    %v738 = vunpack.c.l.b16 %v204
    %v739 = vunpack.c.l.b16 %v205
    %v740 = vunpack.c.h.b16 %v205
    %v741 = vunpack.c.l.b16 %v206
    %v742 = vunpack.c.l.b16 %v207
    %v743 = vunpack.c.h.b16 %v207
    %v744 = vunpack.c.l.b16 %v208
    %v745 = vunpack.c.l.b16 %v209
    %v746 = vunpack.c.h.b16 %v209
    %v747 = vunpack.c.l.b16 %v210
    %v748 = vunpack.c.l.b16 %v211
    %v749 = vunpack.c.h.b16 %v211
    %v750 = vunpack.c.l.b16 %v212
    %v751 = vunpack.c.l.b16 %v213
    %v752 = vunpack.c.h.b16 %v213
    %v753 = vunpack.c.l.b16 %v214
    %v754 = vunpack.c.l.b16 %v215
    %v755 = vunpack.c.h.b16 %v215
    %v756 = vunpack.c.l.b16 %v216
    %v757 = vunpack.c.l.b16 %v217
    %v758 = vunpack.c.h.b16 %v217
    %v759 = vunpack.c.l.b16 %v218
    %v760 = vunpack.c.l.b16 %v219
    %v761 = vunpack.c.h.b16 %v219
    %v762 = vunpack.c.l.b16 %v220
    %v763 = vunpack.c.l.b16 %v221
    %v764 = vunpack.c.h.b16 %v221
    %v765 = vunpack.c.l.b16 %v222
    %v766 = vunpack.c.l.b16 %v223
    %v767 = vunpack.c.h.b16 %v223
    %v768 = vunpack.c.l.b16 %v224
    %v769 = vunpack.c.l.b16 %v225
    %v770 = vunpack.c.h.b16 %v225
    %v771 = vunpack.c.l.b16 %v226
    %v772 = vunpack.c.l.b16 %v227
    %v773 = vunpack.c.h.b16 %v227
    %v774 = vunpack.c.l.b16 %v228
    %v775 = vpack.c.b16 %v730, %v727
    %v776 = vpack.c.b16 %v731, %v728
    %v777 = vpack.c.b16 %v732, %v729
    %v778 = vpack.c.b16 %v736, %v733
    %v779 = vpack.c.b16 %v737, %v734
    %v780 = vpack.c.b16 %v738, %v735
    %v781 = vpack.c.b16 %v742, %v739
    %v782 = vpack.c.b16 %v743, %v740
    %v783 = vpack.c.b16 %v744, %v741
    %v784 = vpack.c.b16 %v748, %v745
    %v785 = vpack.c.b16 %v749, %v746
    %v786 = vpack.c.b16 %v750, %v747
    %v787 = vpack.c.b16 %v754, %v751
    %v788 = vpack.c.b16 %v755, %v752
    %v789 = vpack.c.b16 %v756, %v753
    %v790 = vpack.c.b16 %v760, %v757
    %v791 = vpack.c.b16 %v761, %v758
    %v792 = vpack.c.b16 %v762, %v759
    %v793 = vpack.c.b16 %v766, %v763
    %v794 = vpack.c.b16 %v767, %v764
    %v795 = vpack.c.b16 %v768, %v765
    %v796 = vpack.c.b16 %v772, %v769
    %v797 = vpack.c.b16 %v773, %v770
    %v798 = vpack.c.b16 %v774, %v771
    %823 = vmatprep.subr.bf16.mxu0 %v797
    %824 = vmatpush1.bf16.msra.mxu0 %v796
    %825 = vmatprep.subr.bf16.mxu0 %v794
    %826 = vmatpush1.bf16.msra.mxu0 %v793
    %827 = vmatprep.subr.bf16.mxu0 %v791
    %828 = vmatpush1.bf16.msra.mxu0 %v790
    %829 = vmatprep.subr.bf16.mxu0 %v788
    %830 = vmatpush1.bf16.msra.mxu0 %v787
    %831 = vmatprep.subr.bf16.mxu0 %v785
    %832 = vmatpush1.bf16.msra.mxu0 %v784
    %833 = vmatprep.subr.bf16.mxu0 %v782
    %834 = vmatpush1.bf16.msra.mxu0 %v781
    %835 = vmatprep.subr.bf16.mxu0 %v779
    %836 = vmatpush1.bf16.msra.mxu0 %v778
    %837 = vmatprep.subr.bf16.mxu0 %v776
    %838 = vmatpush1.bf16.msra.mxu0 %v775
    %839 = vmatprep.subr.bf16.mxu0 0
    %840 = vmatpush2.bf16.msra.mxu0 0
    %841 = vmatprep.subr.bf16.mxu0 0
    %842 = vmatpush2.bf16.msra.mxu0 0
    %843 = vmatprep.subr.bf16.mxu0 0
    %844 = vmatpush2.bf16.msra.mxu0 0
    %845 = vmatprep.subr.bf16.mxu0 0
    %846 = vmatpush2.bf16.msra.mxu0 0
    %847 = vmatprep.subr.bf16.mxu0 0
    %848 = vmatpush2.bf16.msra.mxu0 0
    %849 = vmatprep.subr.bf16.mxu0 0
    %850 = vmatpush2.bf16.msra.mxu0 0
    %851 = vmatprep.subr.bf16.mxu0 0
    %852 = vmatpush2.bf16.msra.mxu0 0
    %853 = vmatprep.subr.bf16.mxu0 0
    %854 = vmatpush2.bf16.msra.mxu0 0
    %855 = vmatprep.mubr.bf16.mxu0 0
    %856 = vmatmul.mubr.bf16.gmra.mxu0 %v694
    %v857 = vpop.f32.mrf.mxu0
    %v858 = vadd.f32 0.0, %v857
    %v859 = vpop.f32.mrf.mxu0
    %v860 = vadd.f32 0.0, %v859
    %v861 = vpop.f32.mrf.mxu0
    %v862 = vadd.f32 0.0, %v861
    %v863 = vpop.f32.mrf.mxu0
    %v864 = vadd.f32 0.0, %v863
    %865 = vdwg.mxu0
    %866 = vmatprep.subr.bf16.mxu0 0
    %867 = vmatpush1.bf16.msra.mxu0 %v798
    %868 = vmatprep.subr.bf16.mxu0 0
    %869 = vmatpush1.bf16.msra.mxu0 %v795
    %870 = vmatprep.subr.bf16.mxu0 0
    %871 = vmatpush1.bf16.msra.mxu0 %v792
    %872 = vmatprep.subr.bf16.mxu0 0
    %873 = vmatpush1.bf16.msra.mxu0 %v789
    %874 = vmatprep.subr.bf16.mxu0 0
    %875 = vmatpush1.bf16.msra.mxu0 %v786
    %876 = vmatprep.subr.bf16.mxu0 0
    %877 = vmatpush1.bf16.msra.mxu0 %v783
    %878 = vmatprep.subr.bf16.mxu0 0
    %879 = vmatpush1.bf16.msra.mxu0 %v780
    %880 = vmatprep.subr.bf16.mxu0 0
    %881 = vmatpush1.bf16.msra.mxu0 %v777
    %882 = vmatprep.subr.bf16.mxu0 0
    %883 = vmatpush2.bf16.msra.mxu0 0
    %884 = vmatprep.subr.bf16.mxu0 0
    %885 = vmatpush2.bf16.msra.mxu0 0
    %886 = vmatprep.subr.bf16.mxu0 0
    %887 = vmatpush2.bf16.msra.mxu0 0
    %888 = vmatprep.subr.bf16.mxu0 0
    %889 = vmatpush2.bf16.msra.mxu0 0
    %890 = vmatprep.subr.bf16.mxu0 0
    %891 = vmatpush2.bf16.msra.mxu0 0
    %892 = vmatprep.subr.bf16.mxu0 0
    %893 = vmatpush2.bf16.msra.mxu0 0
    %894 = vmatprep.subr.bf16.mxu0 0
    %895 = vmatpush2.bf16.msra.mxu0 0
    %896 = vmatprep.subr.bf16.mxu0 0
    %897 = vmatpush2.bf16.msra.mxu0 0
    %898 = vmatprep.mubr.bf16.mxu0 0
    %899 = vmatmul.mubr.bf16.gmra.mxu0 %v694
    %v900 = vpop.f32.mrf.mxu0
    %v901 = vadd.f32 0.0, %v900
    %v902 = vpop.f32.mrf.mxu0
    %v903 = vpop.f32.mrf.mxu0
    %v904 = vadd.f32 0.0, %v903
    %v905 = vpop.f32.mrf.mxu0
    %906 = vdwg.mxu0
    %v939 = vunpack.c.l.b16 %v165
    %v940 = vunpack.c.h.b16 %v165
    %v941 = vunpack.c.l.b16 %v166
    %v942 = vunpack.c.l.b16 %v167
    %v943 = vunpack.c.h.b16 %v167
    %v944 = vunpack.c.l.b16 %v168
    %v945 = vunpack.c.l.b16 %v169
    %v946 = vunpack.c.h.b16 %v169
    %v947 = vunpack.c.l.b16 %v170
    %v948 = vunpack.c.l.b16 %v171
    %v949 = vunpack.c.h.b16 %v171
    %v950 = vunpack.c.l.b16 %v172
    %v951 = vunpack.c.l.b16 %v173
    %v952 = vunpack.c.h.b16 %v173
    %v953 = vunpack.c.l.b16 %v174
    %v954 = vunpack.c.l.b16 %v175
    %v955 = vunpack.c.h.b16 %v175
    %v956 = vunpack.c.l.b16 %v176
    %v957 = vunpack.c.l.b16 %v177
    %v958 = vunpack.c.h.b16 %v177
    %v959 = vunpack.c.l.b16 %v178
    %v960 = vunpack.c.l.b16 %v179
    %v961 = vunpack.c.h.b16 %v179
    %v962 = vunpack.c.l.b16 %v180
    %v963 = vunpack.c.l.b16 %v181
    %v964 = vunpack.c.h.b16 %v181
    %v965 = vunpack.c.l.b16 %v182
    %v966 = vunpack.c.l.b16 %v183
    %v967 = vunpack.c.h.b16 %v183
    %v968 = vunpack.c.l.b16 %v184
    %v969 = vunpack.c.l.b16 %v185
    %v970 = vunpack.c.h.b16 %v185
    %v971 = vunpack.c.l.b16 %v186
    %v972 = vunpack.c.l.b16 %v187
    %v973 = vunpack.c.h.b16 %v187
    %v974 = vunpack.c.l.b16 %v188
    %v975 = vunpack.c.l.b16 %v189
    %v976 = vunpack.c.h.b16 %v189
    %v977 = vunpack.c.l.b16 %v190
    %v978 = vunpack.c.l.b16 %v191
    %v979 = vunpack.c.h.b16 %v191
    %v980 = vunpack.c.l.b16 %v192
    %v981 = vunpack.c.l.b16 %v193
    %v982 = vunpack.c.h.b16 %v193
    %v983 = vunpack.c.l.b16 %v194
    %v984 = vunpack.c.l.b16 %v195
    %v985 = vunpack.c.h.b16 %v195
    %v986 = vunpack.c.l.b16 %v196
    %v987 = vpack.c.b16 %v942, %v939
    %v988 = vpack.c.b16 %v943, %v940
    %v989 = vpack.c.b16 %v944, %v941
    %v990 = vpack.c.b16 %v948, %v945
    %v991 = vpack.c.b16 %v949, %v946
    %v992 = vpack.c.b16 %v950, %v947
    %v993 = vpack.c.b16 %v954, %v951
    %v994 = vpack.c.b16 %v955, %v952
    %v995 = vpack.c.b16 %v956, %v953
    %v996 = vpack.c.b16 %v960, %v957
    %v997 = vpack.c.b16 %v961, %v958
    %v998 = vpack.c.b16 %v962, %v959
    %v999 = vpack.c.b16 %v966, %v963
    %v1000 = vpack.c.b16 %v967, %v964
    %v1001 = vpack.c.b16 %v968, %v965
    %v1002 = vpack.c.b16 %v972, %v969
    %v1003 = vpack.c.b16 %v973, %v970
    %v1004 = vpack.c.b16 %v974, %v971
    %v1005 = vpack.c.b16 %v978, %v975
    %v1006 = vpack.c.b16 %v979, %v976
    %v1007 = vpack.c.b16 %v980, %v977
    %v1008 = vpack.c.b16 %v984, %v981
    %v1009 = vpack.c.b16 %v985, %v982
    %v1010 = vpack.c.b16 %v986, %v983
    %1035 = vmatprep.subr.bf16.mxu0 %v1009
    %1036 = vmatpush1.bf16.msra.mxu0 %v1008
    %1037 = vmatprep.subr.bf16.mxu0 %v1006
    %1038 = vmatpush1.bf16.msra.mxu0 %v1005
    %1039 = vmatprep.subr.bf16.mxu0 %v1003
    %1040 = vmatpush1.bf16.msra.mxu0 %v1002
    %1041 = vmatprep.subr.bf16.mxu0 %v1000
    %1042 = vmatpush1.bf16.msra.mxu0 %v999
    %1043 = vmatprep.subr.bf16.mxu0 %v997
    %1044 = vmatpush1.bf16.msra.mxu0 %v996
    %1045 = vmatprep.subr.bf16.mxu0 %v994
    %1046 = vmatpush1.bf16.msra.mxu0 %v993
    %1047 = vmatprep.subr.bf16.mxu0 %v991
    %1048 = vmatpush1.bf16.msra.mxu0 %v990
    %1049 = vmatprep.subr.bf16.mxu0 %v988
    %1050 = vmatpush1.bf16.msra.mxu0 %v987
    %1051 = vmatprep.subr.bf16.mxu0 0
    %1052 = vmatpush2.bf16.msra.mxu0 0
    %1053 = vmatprep.subr.bf16.mxu0 0
    %1054 = vmatpush2.bf16.msra.mxu0 0
    %1055 = vmatprep.subr.bf16.mxu0 0
    %1056 = vmatpush2.bf16.msra.mxu0 0
    %1057 = vmatprep.subr.bf16.mxu0 0
    %1058 = vmatpush2.bf16.msra.mxu0 0
    %1059 = vmatprep.subr.bf16.mxu0 0
    %1060 = vmatpush2.bf16.msra.mxu0 0
    %1061 = vmatprep.subr.bf16.mxu0 0
    %1062 = vmatpush2.bf16.msra.mxu0 0
    %1063 = vmatprep.subr.bf16.mxu0 0
    %1064 = vmatpush2.bf16.msra.mxu0 0
    %1065 = vmatprep.subr.bf16.mxu0 0
    %1066 = vmatpush2.bf16.msra.mxu0 0
    %1067 = vmatprep.mubr.bf16.mxu0 0
    %1068 = vmatmul.mubr.bf16.gmra.mxu0 %v693
    %v1069 = vpop.f32.mrf.mxu0
    %v1070 = vadd.f32 %v858, %v1069
    %v1071 = vpop.f32.mrf.mxu0
    %v1072 = vadd.f32 %v860, %v1071
    %v1073 = vpop.f32.mrf.mxu0
    %v1074 = vadd.f32 %v862, %v1073
    %v1075 = vpop.f32.mrf.mxu0
    %v1076 = vadd.f32 %v864, %v1075
    %1077 = vdwg.mxu0
    %1078 = vmatprep.subr.bf16.mxu0 0
    %1079 = vmatpush1.bf16.msra.mxu0 %v1010
    %1080 = vmatprep.subr.bf16.mxu0 0
    %1081 = vmatpush1.bf16.msra.mxu0 %v1007
    %1082 = vmatprep.subr.bf16.mxu0 0
    %1083 = vmatpush1.bf16.msra.mxu0 %v1004
    %1084 = vmatprep.subr.bf16.mxu0 0
    %1085 = vmatpush1.bf16.msra.mxu0 %v1001
    %1086 = vmatprep.subr.bf16.mxu0 0
    %1087 = vmatpush1.bf16.msra.mxu0 %v998
    %1088 = vmatprep.subr.bf16.mxu0 0
    %1089 = vmatpush1.bf16.msra.mxu0 %v995
    %1090 = vmatprep.subr.bf16.mxu0 0
    %1091 = vmatpush1.bf16.msra.mxu0 %v992
    %1092 = vmatprep.subr.bf16.mxu0 0
    %1093 = vmatpush1.bf16.msra.mxu0 %v989
    %1094 = vmatprep.subr.bf16.mxu0 0
    %1095 = vmatpush2.bf16.msra.mxu0 0
    %1096 = vmatprep.subr.bf16.mxu0 0
    %1097 = vmatpush2.bf16.msra.mxu0 0
    %1098 = vmatprep.subr.bf16.mxu0 0
    %1099 = vmatpush2.bf16.msra.mxu0 0
    %1100 = vmatprep.subr.bf16.mxu0 0
    %1101 = vmatpush2.bf16.msra.mxu0 0
    %1102 = vmatprep.subr.bf16.mxu0 0
    %1103 = vmatpush2.bf16.msra.mxu0 0
    %1104 = vmatprep.subr.bf16.mxu0 0
    %1105 = vmatpush2.bf16.msra.mxu0 0
    %1106 = vmatprep.subr.bf16.mxu0 0
    %1107 = vmatpush2.bf16.msra.mxu0 0
    %1108 = vmatprep.subr.bf16.mxu0 0
    %1109 = vmatpush2.bf16.msra.mxu0 0
    %1110 = vmatprep.mubr.bf16.mxu0 0
    %1111 = vmatmul.mubr.bf16.gmra.mxu0 %v693
    %v1112 = vpop.f32.mrf.mxu0
    %v1113 = vadd.f32 %v901, %v1112
    %v1114 = vpop.f32.mrf.mxu0
    %v1115 = vpop.f32.mrf.mxu0
    %v1116 = vadd.f32 %v904, %v1115
    %v1117 = vpop.f32.mrf.mxu0
    %1118 = vdwg.mxu0
    %v1120 = vlaneseq
    %v1121 = vshrl.u32 %v1120, 7
    %v1122 = vsub.s32 0, %v1121
    %v1123 = vrot.slane %v229, %v1122
    %v1124 = vlaneseq
    %v1125 = vshrl.u32 %v1124, 7
    %v1126 = vsub.s32 1, %v1125
    %v1127 = vrot.slane %v229, %v1126
    %v1128 = vlaneseq
    %v1129 = vshrl.u32 %v1128, 7
    %v1130 = vsub.s32 2, %v1129
    %v1131 = vrot.slane %v229, %v1130
    %v1135 = vadd.f32 %v1070, %v1123
    %v1136 = vadd.f32 %v1072, %v1127
    %v1137 = vadd.f32 %v1113, %v1131
    %v1138 = vadd.f32 %v1074, %v1123
    %v1139 = vadd.f32 %v1076, %v1127
    %v1140 = vadd.f32 %v1116, %v1131
    %v1142 = vlaneseq
    %v1143 = vshrl.u32 %v1142, 7
    %v1144 = vsub.s32 0, %v1143
    %v1145 = vrot.slane %v262, %v1144
    %v1146 = vlaneseq
    %v1147 = vshrl.u32 %v1146, 7
    %v1148 = vsub.s32 1, %v1147
    %v1149 = vrot.slane %v262, %v1148
    %v1150 = vlaneseq
    %v1151 = vshrl.u32 %v1150, 7
    %v1152 = vsub.s32 2, %v1151
    %v1153 = vrot.slane %v262, %v1152
    %v1189 = vunpack.c.l.b16 %v230
    %v1190 = vunpack.c.h.b16 %v230
    %v1191 = vunpack.c.l.b16 %v231
    %v1192 = vunpack.c.l.b16 %v232
    %v1193 = vunpack.c.h.b16 %v232
    %v1194 = vunpack.c.l.b16 %v233
    %v1195 = vunpack.c.l.b16 %v234
    %v1196 = vunpack.c.h.b16 %v234
    %v1197 = vunpack.c.l.b16 %v235
    %v1198 = vunpack.c.l.b16 %v236
    %v1199 = vunpack.c.h.b16 %v236
    %v1200 = vunpack.c.l.b16 %v237
    %v1201 = vunpack.c.l.b16 %v238
    %v1202 = vunpack.c.h.b16 %v238
    %v1203 = vunpack.c.l.b16 %v239
    %v1204 = vunpack.c.l.b16 %v240
    %v1205 = vunpack.c.h.b16 %v240
    %v1206 = vunpack.c.l.b16 %v241
    %v1207 = vunpack.c.l.b16 %v242
    %v1208 = vunpack.c.h.b16 %v242
    %v1209 = vunpack.c.l.b16 %v243
    %v1210 = vunpack.c.l.b16 %v244
    %v1211 = vunpack.c.h.b16 %v244
    %v1212 = vunpack.c.l.b16 %v245
    %v1213 = vunpack.c.l.b16 %v246
    %v1214 = vunpack.c.h.b16 %v246
    %v1215 = vunpack.c.l.b16 %v247
    %v1216 = vunpack.c.l.b16 %v248
    %v1217 = vunpack.c.h.b16 %v248
    %v1218 = vunpack.c.l.b16 %v249
    %v1219 = vunpack.c.l.b16 %v250
    %v1220 = vunpack.c.h.b16 %v250
    %v1221 = vunpack.c.l.b16 %v251
    %v1222 = vunpack.c.l.b16 %v252
    %v1223 = vunpack.c.h.b16 %v252
    %v1224 = vunpack.c.l.b16 %v253
    %v1225 = vunpack.c.l.b16 %v254
    %v1226 = vunpack.c.h.b16 %v254
    %v1227 = vunpack.c.l.b16 %v255
    %v1228 = vunpack.c.l.b16 %v256
    %v1229 = vunpack.c.h.b16 %v256
    %v1230 = vunpack.c.l.b16 %v257
    %v1231 = vunpack.c.l.b16 %v258
    %v1232 = vunpack.c.h.b16 %v258
    %v1233 = vunpack.c.l.b16 %v259
    %v1234 = vunpack.c.l.b16 %v260
    %v1235 = vunpack.c.h.b16 %v260
    %v1236 = vunpack.c.l.b16 %v261
    %v1237 = vpack.c.b16 %v1192, %v1189
    %v1238 = vpack.c.b16 %v1193, %v1190
    %v1239 = vpack.c.b16 %v1194, %v1191
    %v1240 = vpack.c.b16 %v1198, %v1195
    %v1241 = vpack.c.b16 %v1199, %v1196
    %v1242 = vpack.c.b16 %v1200, %v1197
    %v1243 = vpack.c.b16 %v1204, %v1201
    %v1244 = vpack.c.b16 %v1205, %v1202
    %v1245 = vpack.c.b16 %v1206, %v1203
    %v1246 = vpack.c.b16 %v1210, %v1207
    %v1247 = vpack.c.b16 %v1211, %v1208
    %v1248 = vpack.c.b16 %v1212, %v1209
    %v1249 = vpack.c.b16 %v1216, %v1213
    %v1250 = vpack.c.b16 %v1217, %v1214
    %v1251 = vpack.c.b16 %v1218, %v1215
    %v1252 = vpack.c.b16 %v1222, %v1219
    %v1253 = vpack.c.b16 %v1223, %v1220
    %v1254 = vpack.c.b16 %v1224, %v1221
    %v1255 = vpack.c.b16 %v1228, %v1225
    %v1256 = vpack.c.b16 %v1229, %v1226
    %v1257 = vpack.c.b16 %v1230, %v1227
    %v1258 = vpack.c.b16 %v1234, %v1231
    %v1259 = vpack.c.b16 %v1235, %v1232
    %v1260 = vpack.c.b16 %v1236, %v1233
    %1285 = vmatprep.subr.bf16.mxu0 %v1259
    %1286 = vmatpush1.bf16.msra.mxu0 %v1258
    %1287 = vmatprep.subr.bf16.mxu0 %v1256
    %1288 = vmatpush1.bf16.msra.mxu0 %v1255
    %1289 = vmatprep.subr.bf16.mxu0 %v1253
    %1290 = vmatpush1.bf16.msra.mxu0 %v1252
    %1291 = vmatprep.subr.bf16.mxu0 %v1250
    %1292 = vmatpush1.bf16.msra.mxu0 %v1249
    %1293 = vmatprep.subr.bf16.mxu0 %v1247
    %1294 = vmatpush1.bf16.msra.mxu0 %v1246
    %1295 = vmatprep.subr.bf16.mxu0 %v1244
    %1296 = vmatpush1.bf16.msra.mxu0 %v1243
    %1297 = vmatprep.subr.bf16.mxu0 %v1241
    %1298 = vmatpush1.bf16.msra.mxu0 %v1240
    %1299 = vmatprep.subr.bf16.mxu0 %v1238
    %1300 = vmatpush1.bf16.msra.mxu0 %v1237
    %1301 = vmatprep.subr.bf16.mxu0 0
    %1302 = vmatpush2.bf16.msra.mxu0 0
    %1303 = vmatprep.subr.bf16.mxu0 0
    %1304 = vmatpush2.bf16.msra.mxu0 0
    %1305 = vmatprep.subr.bf16.mxu0 0
    %1306 = vmatpush2.bf16.msra.mxu0 0
    %1307 = vmatprep.subr.bf16.mxu0 0
    %1308 = vmatpush2.bf16.msra.mxu0 0
    %1309 = vmatprep.subr.bf16.mxu0 0
    %1310 = vmatpush2.bf16.msra.mxu0 0
    %1311 = vmatprep.subr.bf16.mxu0 0
    %1312 = vmatpush2.bf16.msra.mxu0 0
    %1313 = vmatprep.subr.bf16.mxu0 0
    %1314 = vmatpush2.bf16.msra.mxu0 0
    %1315 = vmatprep.subr.bf16.mxu0 0
    %1316 = vmatpush2.bf16.msra.mxu0 0
    %1317 = vmatprep.mubr.bf16.mxu0 0
    %1318 = vmatmul.mubr.bf16.gmra.mxu0 %v265
    %v1319 = vpop.f32.mrf.mxu0
    %v1320 = vadd.f32 %v1145, %v1319
    %v1321 = vpop.f32.mrf.mxu0
    %v1322 = vadd.f32 %v1149, %v1321
    %v1323 = vpop.f32.mrf.mxu0
    %v1324 = vadd.f32 %v1145, %v1323
    %v1325 = vpop.f32.mrf.mxu0
    %v1326 = vadd.f32 %v1149, %v1325
    %1327 = vdwg.mxu0
    %1328 = vmatprep.subr.bf16.mxu0 0
    %1329 = vmatpush1.bf16.msra.mxu0 %v1260
    %1330 = vmatprep.subr.bf16.mxu0 0
    %1331 = vmatpush1.bf16.msra.mxu0 %v1257
    %1332 = vmatprep.subr.bf16.mxu0 0
    %1333 = vmatpush1.bf16.msra.mxu0 %v1254
    %1334 = vmatprep.subr.bf16.mxu0 0
    %1335 = vmatpush1.bf16.msra.mxu0 %v1251
    %1336 = vmatprep.subr.bf16.mxu0 0
    %1337 = vmatpush1.bf16.msra.mxu0 %v1248
    %1338 = vmatprep.subr.bf16.mxu0 0
    %1339 = vmatpush1.bf16.msra.mxu0 %v1245
    %1340 = vmatprep.subr.bf16.mxu0 0
    %1341 = vmatpush1.bf16.msra.mxu0 %v1242
    %1342 = vmatprep.subr.bf16.mxu0 0
    %1343 = vmatpush1.bf16.msra.mxu0 %v1239
    %1344 = vmatprep.subr.bf16.mxu0 0
    %1345 = vmatpush2.bf16.msra.mxu0 0
    %1346 = vmatprep.subr.bf16.mxu0 0
    %1347 = vmatpush2.bf16.msra.mxu0 0
    %1348 = vmatprep.subr.bf16.mxu0 0
    %1349 = vmatpush2.bf16.msra.mxu0 0
    %1350 = vmatprep.subr.bf16.mxu0 0
    %1351 = vmatpush2.bf16.msra.mxu0 0
    %1352 = vmatprep.subr.bf16.mxu0 0
    %1353 = vmatpush2.bf16.msra.mxu0 0
    %1354 = vmatprep.subr.bf16.mxu0 0
    %1355 = vmatpush2.bf16.msra.mxu0 0
    %1356 = vmatprep.subr.bf16.mxu0 0
    %1357 = vmatpush2.bf16.msra.mxu0 0
    %1358 = vmatprep.subr.bf16.mxu0 0
    %1359 = vmatpush2.bf16.msra.mxu0 0
    %1360 = vmatprep.mubr.bf16.mxu0 0
    %1361 = vmatmul.mubr.bf16.gmra.mxu0 %v265
    %v1362 = vpop.f32.mrf.mxu0
    %v1363 = vadd.f32 %v1153, %v1362
    %v1364 = vpop.f32.mrf.mxu0
    %v1365 = vpop.f32.mrf.mxu0
    %v1366 = vadd.f32 %v1153, %v1365
    %v1367 = vpop.f32.mrf.mxu0
    %1368 = vdwg.mxu0
    %v1369 = vadd.f32 %v1135, %v1320
    %v1370 = vadd.f32 %v1138, %v1324
    %v1371 = vxor.u32 %v1369, 2147483648
    %v1372 = vxor.u32 %v1370, 2147483648
    %v1373 = vmul.f32 %v1371, 1.442695
    %v1374 = vpow.pop %v1373
    %v1375 = vmul.f32 %v1372, 1.442695
    %v1376 = vpow.pop %v1375
    %v1377 = vadd.f32 %v1374, 1.0
    %v1378 = vadd.f32 %v1376, 1.0
    %v1379 = vrcp.pop %v1377
    %v1380 = vmul.f32 1.0, %v1379
    %v1381 = vrcp.pop %v1378
    %v1382 = vmul.f32 1.0, %v1381
    %v1383 = vadd.f32 %v1136, %v1322
    %v1384 = vadd.f32 %v1139, %v1326
    %v1385 = vxor.u32 %v1383, 2147483648
    %v1386 = vxor.u32 %v1384, 2147483648
    %v1387 = vmul.f32 %v1385, 1.442695
    %v1388 = vpow.pop %v1387
    %v1389 = vmul.f32 %v1386, 1.442695
    %v1390 = vpow.pop %v1389
    %v1391 = vadd.f32 %v1388, 1.0
    %v1392 = vadd.f32 %v1390, 1.0
    %v1393 = vrcp.pop %v1391
    %v1394 = vmul.f32 1.0, %v1393
    %v1395 = vrcp.pop %v1392
    %v1396 = vmul.f32 1.0, %v1395
    %v1397 = vmul.f32 %v1380, %v1363
    %v1398 = vmul.f32 %v1382, %v1366
    %v1399 = vadd.f32 %v1137, %v1397
    %v1400 = vadd.f32 %v1140, %v1398
    %v1401 = vtanh.pop %v1399
    %v1402 = vtanh.pop %v1400
    %v1403 = vsub.f32 %v263, %v1401
    %v1404 = vsub.f32 %v264, %v1402
    %v1405 = vmul.f32 %v1394, %v1403
    %v1406 = vmul.f32 %v1396, %v1404
    %v1407 = vadd.f32 %v1401, %v1405
    %v1408 = vadd.f32 %v1402, %v1406
    %1409 = vst [vmem:[#allocation16] sm:$0xff] %v1407
    %1410 = vst [vmem:[#allocation16 + $0x8] sm:$0xff] %v1408
    // Predicated region
    $region74: #{tpu_custom_call.1} parent=1 // pred_check
      _
    $region75: #{tpu_custom_call.1} parent=1 // pred_check_branch
      %1412 = sbr.rel (0) target = $region77
    $region76: #{tpu_custom_call.1} parent=1 // pred_region
      %s1414 = ssub.s32 256, 256
      %1415 = vsyncadd [#allocation4], %s1414
      %s1416 = sshll.u32 [#allocation16], 4
      %s1417 = int_to_ptr.vmem [resolvable:$true] %s1416
      %1422 = dma.vmem_to_hbm [thread:$0]  %s1417, 256, %s10, [#allocation4], 128, 128, 8
    $region77: #{tpu_custom_call.1} parent=1 // pred_fallthru
      _
    // Predicated region
    $region78: #{tpu_custom_call.1} parent=1 // pred_check
      _
    $region79: #{tpu_custom_call.1} parent=1 // pred_check_branch
      %1424 = sbr.rel (0) target = $region81
    $region80: #{tpu_custom_call.1} parent=1 // pred_region
      %1425 = dma.done [#allocation4], 256
    $region81: #{tpu_custom_call.1} parent=1 // pred_fallthru
      _
    %1426 = vsyncpa [#allocation3], 1
    %1427 = vsyncpa [#allocation6], 1
    %1428 = vsyncpa [#allocation9], 1
    %1429 = vsyncpa [#allocation12], 1
    %1430 = vsyncpa [#allocation15], 1
    %1431 = vsyncpa [#allocation4], 1

</llo_original>
